<compile_context>
chip_gen: v7x
topology: tpu7x:2x2x1
jax: 0.10.0
libtpu: 0.0.40
codegen_flags: <defaults>
</compile_context>

<pallas_src>
import functools

import jax
import jax.numpy as jnp
from jax import lax
from jax.experimental import pallas as pl
from jax.experimental.pallas import tpu as pltpu

BN_EPS = 1e-5
LANE = 128
SUBLANE = 8


def _round_up(x, m):
    return (x + m - 1) // m * m


def _vmem_limit_bytes():
    # ~75% of physical VMEM, capped at 96 MiB:
    #   v5e/v6e (128 MiB physical) -> 96 MiB, v7x (64 MiB physical) -> 48 MiB.
    try:
        cap = pltpu.get_tpu_info().vmem_capacity_bytes
        return int(min(cap * 3 // 4, 96 * 1024 * 1024))
    except Exception:  # pragma: no cover - conservative fallback
        return 48 * 1024 * 1024


# ---------------- phase 1: h1_pre = x @ w1, per-tile column stats ----------
def _stats1_kernel(x_ref, w1_ref, sum_ref, sumsq_ref):
    h = jnp.dot(x_ref[...], w1_ref[...], preferred_element_type=jnp.float32)
    sum_ref[...] = jnp.sum(h, axis=0, keepdims=True)[None]
    sumsq_ref[...] = jnp.sum(h * h, axis=0, keepdims=True)[None]


# ------ phase 2: recompute h1, folded BN1+ReLU, h2_pre stats (per tile) ----
def _stats2_kernel(x_ref, w1_ref, sc1_ref, sh1_ref, w2_ref,
                   sum_ref, sumsq_ref, *, tm, n_valid, mask_rows):
    h1 = jnp.dot(x_ref[...], w1_ref[...], preferred_element_type=jnp.float32)
    h1 = jnp.maximum(h1 * sc1_ref[...] + sh1_ref[...], 0.0)
    if mask_rows:
        # padded rows produce relu(shift1) != 0; zero them so they do not
        # pollute the second matmul / BN2 statistics.
        row = pl.program_id(0) * tm + lax.broadcasted_iota(jnp.int32, (tm, 1), 0)
        h1 = jnp.where(row < n_valid, h1, 0.0)
    h2 = jnp.dot(h1, w2_ref[...], preferred_element_type=jnp.float32)
    sum_ref[...] = jnp.sum(h2, axis=0, keepdims=True)[None]
    sumsq_ref[...] = jnp.sum(h2 * h2, axis=0, keepdims=True)[None]


# --- phase 3: full recompute, folded BN1+ReLU, matmul2, folded BN2+ReLU ----
def _out_kernel(x_ref, w1_ref, sc1_ref, sh1_ref, w2_ref, sc2_ref, sh2_ref,
                o_ref):
    h1 = jnp.dot(x_ref[...], w1_ref[...], preferred_element_type=jnp.float32)
    h1 = jnp.maximum(h1 * sc1_ref[...] + sh1_ref[...], 0.0)
    h2 = jnp.dot(h1, w2_ref[...], preferred_element_type=jnp.float32)
    o_ref[...] = jnp.maximum(h2 * sc2_ref[...] + sh2_ref[...], 0.0
                             ).astype(o_ref.dtype)


def apply_node_func(x, params, *, row_tile=1024):
    """x: [N, D_in] float32 node features; params: dict of MLP/BN parameters."""
    n, d_in = x.shape
    hid = params["w1"].shape[1]
    d_out = params["w2"].shape[1]

    # lane-dense padding ONLY on kernel-produced feature dims (dense vst);
    # x keeps its true d_in (block dim == full array dim is legal).
    hid_p = _round_up(hid, LANE)
    d_out_p = _round_up(d_out, LANE)

    tm = _round_up(min(row_tile, _round_up(n, SUBLANE)), SUBLANE)
    n_pad = _round_up(n, tm)
    n_tiles = n_pad // tm
    mask_rows = n_pad != n

    f32 = jnp.float32
    xr = x.astype(f32)
    if mask_rows:
        xr = jnp.zeros((n_pad, d_in), f32).at[:n].set(xr)
    w1p = jnp.zeros((d_in, hid_p), f32).at[:, :hid].set(params["w1"].astype(f32))
    w2p = jnp.zeros((hid_p, d_out_p), f32).at[:hid, :d_out].set(
        params["w2"].astype(f32))
    g1p = jnp.zeros((1, hid_p), f32).at[:, :hid].set(params["g1"].reshape(1, -1))
    be1p = jnp.zeros((1, hid_p), f32).at[:, :hid].set(params["be1"].reshape(1, -1))
    g2p = jnp.zeros((1, d_out_p), f32).at[:, :d_out].set(params["g2"].reshape(1, -1))
    be2p = jnp.zeros((1, d_out_p), f32).at[:, :d_out].set(params["be2"].reshape(1, -1))
    # NOTE: params["b1"]/params["b2"] are intentionally unused — BatchNorm
    # re-centers immediately after each Linear, so the biases cancel exactly.

    cp = pltpu.CompilerParams(dimension_semantics=("parallel",),
                              vmem_limit_bytes=_vmem_limit_bytes())

    x_spec = pl.BlockSpec((tm, d_in), lambda i: (i, 0))
    # Weight / scale-shift blocks use a constant index -> fetched once and
    # resident across the grid.  (If hid/d_out grow to >=2048 on v7x, cap
    # row_tile at 512 or mark these specs pipeline_mode=pl.Buffered(1).)
    w1_spec = pl.BlockSpec((d_in, hid_p), lambda i: (0, 0))
    w2_spec = pl.BlockSpec((hid_p, d_out_p), lambda i: (0, 0))
    vec_h = pl.BlockSpec((1, hid_p), lambda i: (0, 0))
    vec_o = pl.BlockSpec((1, d_out_p), lambda i: (0, 0))
    stat_h = pl.BlockSpec((1, 1, hid_p), lambda i: (i, 0, 0))
    stat_o = pl.BlockSpec((1, 1, d_out_p), lambda i: (i, 0, 0))
    out_spec = pl.BlockSpec((tm, d_out_p), lambda i: (i, 0))

    # ---------------- phase 1: stats of h1_pre ----------------
    s1, ss1 = pl.pallas_call(
        _stats1_kernel,
        grid=(n_tiles,),
        in_specs=[x_spec, w1_spec],
        out_specs=[stat_h, stat_h],
        out_shape=[jax.ShapeDtypeStruct((n_tiles, 1, hid_p), f32)] * 2,
        compiler_params=cp,
    )(xr, w1p)

    inv_n = jnp.float32(1.0 / n)
    mean1 = jnp.sum(s1, axis=0) * inv_n
    var1 = jnp.maximum(jnp.sum(ss1, axis=0) * inv_n - mean1 * mean1, 0.0)
    scale1 = g1p * lax.rsqrt(var1 + BN_EPS)
    shift1 = be1p - mean1 * scale1

    # ---------------- phase 2: stats of h2_pre ----------------
    s2, ss2 = pl.pallas_call(
        functools.partial(_stats2_kernel, tm=tm, n_valid=n, mask_rows=mask_rows),
        grid=(n_tiles,),
        in_specs=[x_spec, w1_spec, vec_h, vec_h, w2_spec],
        out_specs=[stat_o, stat_o],
        out_shape=[jax.ShapeDtypeStruct((n_tiles, 1, d_out_p), f32)] * 2,
        compiler_params=cp,
    )(xr, w1p, scale1, shift1, w2p)

    mean2 = jnp.sum(s2, axis=0) * inv_n
    var2 = jnp.maximum(jnp.sum(ss2, axis=0) * inv_n - mean2 * mean2, 0.0)
    scale2 = g2p * lax.rsqrt(var2 + BN_EPS)
    shift2 = be2p - mean2 * scale2

    # ---------------- phase 3: recompute + final output ----------------
    out_p = pl.pallas_call(
        _out_kernel,
        grid=(n_tiles,),
        in_specs=[x_spec, w1_spec, vec_h, vec_h, w2_spec, vec_o, vec_o],
        out_specs=out_spec,
        out_shape=jax.ShapeDtypeStruct((n_pad, d_out_p), f32),
        compiler_params=cp,
    )(xr, w1p, scale1, shift1, w2p, scale2, shift2)

    return out_p[:n, :d_out]


def reference(x, p):
    """Pure-JAX reference of the same forward pass (with biases)."""
    h1 = x @ p["w1"] + p["b1"]
    m1 = h1.mean(0, keepdims=True)
    v1 = ((h1 - m1) ** 2).mean(0, keepdims=True)
    h1 = jnp.maximum(p["g1"] * (h1 - m1) / jnp.sqrt(v1 + BN_EPS) + p["be1"], 0.0)
    h2 = h1 @ p["w2"] + p["b2"]
    m2 = h2.mean(0, keepdims=True)
    v2 = ((h2 - m2) ** 2).mean(0, keepdims=True)
    h2 = p["g2"] * (h2 - m2) / jnp.sqrt(v2 + BN_EPS) + p["be2"]
    return jnp.maximum(h2, 0.0)


def _make_params(key, d_in, hid, d_out):
    kw1, kw2, kb1, kb2, kg1, kg2 = jax.random.split(key, 6)
    return {
        "w1": jax.random.normal(kw1, (d_in, hid), jnp.float32) / jnp.sqrt(d_in),
        "b1": 0.1 * jax.random.normal(kb1, (hid,), jnp.float32),
        "g1": jnp.ones((hid,), jnp.float32),
        "be1": jnp.zeros((hid,), jnp.float32),
        "w2": jax.random.normal(kw2, (hid, d_out), jnp.float32) / jnp.sqrt(hid),
        "b2": 0.1 * jax.random.normal(kb2, (d_out,), jnp.float32),
        "g2": 1.0 + 0.1 * jax.random.normal(kg2, (1, d_out), jnp.float32),
        "be2": jnp.full((1, d_out), 0.05, jnp.float32),
    }


if __name__ == "__main__":
    key = jax.random.PRNGKey(0)
    kx1, kx2, kp = jax.random.split(key, 3)

    D_IN, HID, D_OUT = 16, 32, 32
    params = _make_params(kp, D_IN, HID, D_OUT)

    # case 1: multi-tile grid with row padding (exercises masking + per-tile
    # partial-stat reduction) at the default 1024-row tile.
    x_big = jax.random.normal(kx1, (2500, D_IN), dtype=jnp.float32)
    out_big = apply_node_func(x_big, params)
    jax.block_until_ready(out_big)
    ref_big = reference(x_big, params)
    assert out_big.shape == (2500, D_OUT)
    assert jnp.allclose(out_big, ref_big, atol=2e-3, rtol=2e-3)

    # case 2: single-tile path, no row padding.
    x_small = jax.random.normal(kx2, (64, D_IN), dtype=jnp.float32)
    out_small = apply_node_func(x_small, params)
    jax.block_until_ready(out_small)
    ref_small = reference(x_small, params)
    assert out_small.shape == (64, D_OUT)
    assert jnp.allclose(out_small, ref_small, atol=2e-3, rtol=2e-3)

    print("KERNEL_OK")
</pallas_src>

<mosaic_0001>
module attributes {stable_mosaic.version = 11 : i64} {
  func.func @_stats1_kernel(%arg0: i32, %arg1: memref<1024x16xf32, #tpu.memory_space<vmem>>, %arg2: memref<16x128xf32, #tpu.memory_space<vmem>>, %arg3: memref<1x1x128xf32, #tpu.memory_space<vmem>>, %arg4: memref<1x1x128xf32, #tpu.memory_space<vmem>>) attributes {dimension_semantics = [#tpu.dimension_semantics<parallel>], iteration_bounds = array<i64: 3>, scalar_prefetch = 0 : i64, scratch_operands = 0 : i64, tpu.core_type = #tpu.core_type<tc>, window_params = [{transform_indices = @transform_0, window_bounds = array<i64: 1024, 16>}, {pipeline_mode = #tpu.pipeline_mode<synchronous>, transform_indices = @transform_1, window_bounds = array<i64: 16, 128>}, {transform_indices = @transform_2, window_bounds = array<i64: 1, 1, 128>}, {transform_indices = @transform_3, window_bounds = array<i64: 1, 1, 128>}]} {
    %c0 = arith.constant 0 : index
    %c0_0 = arith.constant 0 : index
    %0 = vector.load %arg1[%c0, %c0_0] : memref<1024x16xf32, #tpu.memory_space<vmem>>, vector<1024x16xf32>
    %c0_1 = arith.constant 0 : index
    %c0_2 = arith.constant 0 : index
    %1 = vector.load %arg2[%c0_1, %c0_2] : memref<16x128xf32, #tpu.memory_space<vmem>>, vector<16x128xf32>
    %cst = arith.constant dense<0.000000e+00> : vector<1024x128xf32>
    %2 = tpu.matmul %0, %1, %cst {dimension_numbers = #tpu.dot_dimension_numbers<[1], [0], [0], [1], [0, 0, 1, 1], [], []>} : vector<1024x16xf32>, vector<16x128xf32>, vector<1024x128xf32> -> vector<1024x128xf32>
    %cst_3 = arith.constant dense<0.000000e+00> : vector<128xf32>
    %3 = vector.multi_reduction <add>, %2, %cst_3 [0] : vector<1024x128xf32> to vector<128xf32>
    %4 = vector.shape_cast %3 : vector<128xf32> to vector<1x128xf32>
    %5 = vector.shape_cast %4 : vector<1x128xf32> to vector<1x1x128xf32>
    %c0_4 = arith.constant 0 : index
    %c0_5 = arith.constant 0 : index
    %c0_6 = arith.constant 0 : index
    %6 = vector.load %arg3[%c0_4, %c0_5, %c0_6] : memref<1x1x128xf32, #tpu.memory_space<vmem>>, vector<1x1x128xf32>
    tpu.vector_store %arg3[%c0_4, %c0_5, %c0_6], %5 {strides = array<i32>} : memref<1x1x128xf32, #tpu.memory_space<vmem>>, vector<1x1x128xf32>,
    %7 = arith.mulf %2, %2 : vector<1024x128xf32>
    %cst_7 = arith.constant dense<0.000000e+00> : vector<128xf32>
    %8 = vector.multi_reduction <add>, %7, %cst_7 [0] : vector<1024x128xf32> to vector<128xf32>
    %9 = vector.shape_cast %8 : vector<128xf32> to vector<1x128xf32>
    %10 = vector.shape_cast %9 : vector<1x128xf32> to vector<1x1x128xf32>
    %c0_8 = arith.constant 0 : index
    %c0_9 = arith.constant 0 : index
    %c0_10 = arith.constant 0 : index
    %11 = vector.load %arg4[%c0_8, %c0_9, %c0_10] : memref<1x1x128xf32, #tpu.memory_space<vmem>>, vector<1x1x128xf32>
    tpu.vector_store %arg4[%c0_8, %c0_9, %c0_10], %10 {strides = array<i32>} : memref<1x1x128xf32, #tpu.memory_space<vmem>>, vector<1x1x128xf32>,
    return
  }
  func.func @transform_0(%arg0: i32) -> (i32, i32) {
    %c0_i32 = arith.constant 0 : i32
    %c0_i32_0 = arith.constant 0 : i32
    return %arg0, %c0_i32 : i32, i32
  }
  func.func @transform_1(%arg0: i32) -> (i32, i32) {
    %c0_i32 = arith.constant 0 : i32
    %c0_i32_0 = arith.constant 0 : i32
    %c0_i32_1 = arith.constant 0 : i32
    return %c0_i32, %c0_i32_0 : i32, i32
  }
  func.func @transform_2(%arg0: i32) -> (i32, i32, i32) {
    %c0_i32 = arith.constant 0 : i32
    %c0_i32_0 = arith.constant 0 : i32
    %c0_i32_1 = arith.constant 0 : i32
    return %arg0, %c0_i32, %c0_i32_0 : i32, i32, i32
  }
  func.func @transform_3(%arg0: i32) -> (i32, i32, i32) {
    %c0_i32 = arith.constant 0 : i32
    %c0_i32_0 = arith.constant 0 : i32
    %c0_i32_1 = arith.constant 0 : i32
    return %arg0, %c0_i32, %c0_i32_0 : i32, i32, i32
  }
}

</mosaic_0001>

<llo_original>
// kernel: tpu_custom_call.1
$region0: #{tpu_custom_call.1}
  #allocation0 [shape = 'u32[]', space=smem, size = 0x4, offset = 0x4, fixed_abs, tag = 'smem constant byte address 0x4 - core index']
  #allocation1 [shape = 'u32[144,128]{1,0:T(1,128)}', space=vmem, size = 0x12000, scoped, tag = 'internal scratch']
  %s0 = inlined_call_operand.vmem [shape: f32[3072,16], index: 0, kind: input, shape index: {}]
  %s1 = inlined_call_operand.vmem [shape: f32[16,128], index: 1, kind: input, shape index: {}]
  %s2 = inlined_call_operand.hbm [shape: f32[3,1,128], index: 2, kind: output, shape index: {0}]
  %s3 = inlined_call_operand.hbm [shape: f32[3,1,128], index: 3, kind: output, shape index: {1}]
  %4 = xla_tuple %s2, %s3
  %s5 = sld [smem:[#allocation0]]
  $region49: #{tpu_custom_call.1} parent=0
    _
  %s7 = ssub.s32 1, %s5
  %s8 = scalar_select 0, %s7, %s5
  $region1: #{tpu_custom_call.1} parent=0
    #allocation2 [shape = 'u8[1024]{0}', space=vmem, size = 0x400, scoped, tag = 'output window, operand 0']
    #allocation3 [shape = 's32[2]{0}', space=sflag, size = 0x8, scoped, tag = 'scoped memory for tpu_custom_call.1']
    #allocation4 [shape = 'u8[1024]{0}', space=vmem, size = 0x400, scoped, tag = 'output window, operand 1']
    #allocation5 [shape = 's32[2]{0}', space=sflag, size = 0x8, scoped, tag = 'scoped memory for tpu_custom_call.1']
    %9 = vsyncpa [#allocation3], 0
    %s10 = scalar_lea.sflag [#allocation3], 1
    %11 = vsyncpa %s10, 0
    %12 = vsyncpa [#allocation5], 0
    %s13 = scalar_lea.sflag [#allocation5], 1
    %14 = vsyncpa %s13, 0
    loop: start=0, step=1, limit=5
    $region2: #{tpu_custom_call.1} parent=1 // loop_pre_header
      _
    $region3: #{tpu_custom_call.1} parent=1 // loop_header
      %s16 = sphi 0, %s20
      %p17 = scmp.ge.s32.totalorder %s16, 5
      %s26 = sphi 0, %s28
      %s29 = sphi 0, %s26
      %s30 = sphi 0, %s29
      %s46 = sphi 0, %s30
      %s50 = sphi 0, %s50
      %s52 = sphi 0, %s50
      %s53 = sphi 0, %s52
      %s67 = sphi 0, %s53
      %s73 = sphi 0, %s75
      %s76 = sphi 0, %s73
      %s77 = sphi 0, %s76
      %s93 = sphi 0, %s77
      %s99 = sphi 0, %s101
      %s102 = sphi 0, %s99
      %s103 = sphi 0, %s102
      %s119 = sphi 0, %s103
    $region4: #{tpu_custom_call.1} parent=1 // loop_header_branch
      %19 = sbr.rel (%p17) target = $region8
    $region5: #{tpu_custom_call.1} parent=1 // loop_body
      %s21 = ssub.s32 %s16, 1
      %s22 = ssub.s32 %s16, 2
      %s23 = sadd.s32 %s16, 1
      %s24 = ssub.s32 %s16, %s23
      %p25 = scmp.eq.s32.totalorder %s24, 0
      %s27 = sadd.s32 %s26, 1
      %s28 = scalar_select %p25, %s26, %s27
      %p31 = pneg %p25
      %p32 = scmp.eq.s32.totalorder %s16, 2
      %p33 = por %p31, %p32
      %p34 = scmp.ne.s32.totalorder %s26, %s29
      %p35 = scmp.eq.s32.totalorder %s16, 0
      %p36 = por %p34, %p35
      %p37 = scmp.ne.s32.totalorder %s26, %s29
      %p38 = scmp.eq.s32.totalorder %s21, 2
      %p39 = por %p37, %p38
      %p40 = scmp.ne.s32.totalorder %s29, %s30
      %p41 = scmp.eq.s32.totalorder %s21, 0
      %p42 = por %p40, %p41
      %p43 = scmp.ne.s32.totalorder %s29, %s30
      %p44 = scmp.eq.s32.totalorder %s22, 2
      %p45 = por %p43, %p44
      %p47 = scmp.ne.s32.totalorder %s30, %s46
      %p48 = scmp.eq.s32.totalorder %s22, 0
      %p49 = por %p47, %p48
      %s51 = sadd.s32 %s50, 1
      %p54 = scmp.eq.s32.totalorder %s16, 2
      %p55 = scmp.ne.s32.totalorder %s50, %s52
      %p56 = scmp.eq.s32.totalorder %s16, 0
      %p57 = por %p55, %p56
      %p58 = scmp.ne.s32.totalorder %s50, %s52
      %p59 = scmp.eq.s32.totalorder %s21, 2
      %p60 = por %p58, %p59
      %p61 = scmp.ne.s32.totalorder %s52, %s53
      %p62 = scmp.eq.s32.totalorder %s21, 0
      %p63 = por %p61, %p62
      %p64 = scmp.ne.s32.totalorder %s52, %s53
      %p65 = scmp.eq.s32.totalorder %s22, 2
      %p66 = por %p64, %p65
      %p68 = scmp.ne.s32.totalorder %s53, %s67
      %p69 = scmp.eq.s32.totalorder %s22, 0
      %p70 = por %p68, %p69
      %s71 = ssub.s32 %s16, %s23
      %p72 = scmp.eq.s32.totalorder %s71, 0
      %s74 = sadd.s32 %s73, 1
      %s75 = scalar_select %p72, %s73, %s74
      %p78 = pneg %p72
      %p79 = scmp.eq.s32.totalorder %s16, 2
      %p80 = por %p78, %p79
      %p81 = scmp.ne.s32.totalorder %s73, %s76
      %p82 = scmp.eq.s32.totalorder %s16, 0
      %p83 = por %p81, %p82
      %p84 = scmp.ne.s32.totalorder %s73, %s76
      %p85 = scmp.eq.s32.totalorder %s21, 2
      %p86 = por %p84, %p85
      %p87 = scmp.ne.s32.totalorder %s76, %s77
      %p88 = scmp.eq.s32.totalorder %s21, 0
      %p89 = por %p87, %p88
      %p90 = scmp.ne.s32.totalorder %s76, %s77
      %p91 = scmp.eq.s32.totalorder %s22, 2
      %p92 = por %p90, %p91
      %p94 = scmp.ne.s32.totalorder %s77, %s93
      %p95 = scmp.eq.s32.totalorder %s22, 0
      %p96 = por %p94, %p95
      %s97 = ssub.s32 %s16, %s23
      %p98 = scmp.eq.s32.totalorder %s97, 0
      %s100 = sadd.s32 %s99, 1
      %s101 = scalar_select %p98, %s99, %s100
      %p104 = pneg %p98
      %p105 = scmp.eq.s32.totalorder %s16, 2
      %p106 = por %p104, %p105
      %p107 = scmp.ne.s32.totalorder %s99, %s102
      %p108 = scmp.eq.s32.totalorder %s16, 0
      %p109 = por %p107, %p108
      %p110 = scmp.ne.s32.totalorder %s99, %s102
      %p111 = scmp.eq.s32.totalorder %s21, 2
      %p112 = por %p110, %p111
      %p113 = scmp.ne.s32.totalorder %s102, %s103
      %p114 = scmp.eq.s32.totalorder %s21, 0
      %p115 = por %p113, %p114
      %p116 = scmp.ne.s32.totalorder %s102, %s103
      %p117 = scmp.eq.s32.totalorder %s22, 2
      %p118 = por %p116, %p117
      %p120 = scmp.ne.s32.totalorder %s103, %s119
      %p121 = scmp.eq.s32.totalorder %s22, 0
      %p122 = por %p120, %p121
      %p123 = scmp.le.s32.totalorder 1, %s16
      %p124 = scmp.lt.s32.totalorder %s16, 4
      %p125 = pnand %p123, %p124
      %p126 = pneg %p125
      // Predicated region
      $region9: #{tpu_custom_call.1} parent=5 // pred_check
        _
      $region10: #{tpu_custom_call.1} parent=5 // pred_check_branch
        %128 = sbr.rel (%p125) target = $region12
      $region11: #{tpu_custom_call.1} parent=5 // pred_region
        %s129 = ssub.s32 %s16, 1
        // Predicated region
        $region13: #{tpu_custom_call.1} parent=11 // pred_check
          %p130 = pneg %p63
        $region14: #{tpu_custom_call.1} parent=11 // pred_check_branch
          %132 = sbr.rel (%p130) target = $region16
        $region15: #{tpu_custom_call.1} parent=11 // pred_region
          _
        $region16: #{tpu_custom_call.1} parent=11 // pred_fallthru
          _
      $region12: #{tpu_custom_call.1} parent=5 // pred_fallthru
        _
      %p133 = scmp.lt.s32.totalorder %s16, 3
      // Predicated region
      $region17: #{tpu_custom_call.1} parent=5 // pred_check
        %p134 = pneg %p133
      $region18: #{tpu_custom_call.1} parent=5 // pred_check_branch
        %136 = sbr.rel (%p134) target = $region20
      $region19: #{tpu_custom_call.1} parent=5 // pred_region
        // Predicated region
        $region21: #{tpu_custom_call.1} parent=19 // pred_check
          %p137 = pneg %p36
        $region22: #{tpu_custom_call.1} parent=19 // pred_check_branch
          %139 = sbr.rel (%p137) target = $region24
        $region23: #{tpu_custom_call.1} parent=19 // pred_region
          %s140 = smul.u32 128, %s16
          %p141 = scmp.lt.s32.totalorder %s140, 383
          %s142 = scalar_select %p141, %s140, 383
          %s143 = smul.addr %s142, 8
          %s144 = scalar_lea.vmem %s0, %s143
          %s145 = smul.u32 128, %s16
        $region24: #{tpu_custom_call.1} parent=19 // pred_fallthru
          _
      $region20: #{tpu_custom_call.1} parent=5 // pred_fallthru
        _
      %p146 = scmp.le.s32.totalorder 1, %s16
      %p147 = scmp.lt.s32.totalorder %s16, 4
      %p148 = pnand %p146, %p147
      %p149 = pneg %p148
      // Predicated region
      $region25: #{tpu_custom_call.1} parent=5 // pred_check
        _
      $region26: #{tpu_custom_call.1} parent=5 // pred_check_branch
        %151 = sbr.rel (%p148) target = $region28
      $region27: #{tpu_custom_call.1} parent=5 // pred_region
        %s152 = ssub.s32 %s16, 1
        %s153 = smul.u32 128, %s21
        %p154 = scmp.lt.s32.totalorder %s153, 383
        %s155 = scalar_select %p154, %s153, 383
        %s156 = smul.addr %s155, 8
        %s157 = scalar_lea.vmem %s0, %s156
        %p158 = pneg %p42
        %p159 = pneg %p39
        %p160 = pneg %p63
        %p161 = pneg %p60
        %p162 = pneg %p89
        %p163 = pneg %p86
        %s164 = sand.u32 %s76, 1
        %s165 = scalar_lea.sflag [#allocation3], %s164
        %s166 = sand.u32 %s76, 1
        %s167 = scalar_lea.vmem [#allocation2], %s166
        %p168 = pneg %p115
        %p169 = pneg %p112
        %s170 = sand.u32 %s102, 1
        %s171 = scalar_lea.sflag [#allocation5], %s170
        %s172 = sand.u32 %s102, 1
        %s173 = scalar_lea.vmem [#allocation4], %s172
        %s174 = smul.u32 128, %s21
        %p175 = scmp.lt.s32.totalorder %s174, 383
        %s176 = scalar_select %p175, %s174, 383
        %s177 = smul.addr %s176, 8
        %s178 = scalar_lea.vmem %s0, %s177
        %s179 = smul.u32 128, %s21
        %v180 = vld [vmem:[%s178] sm:$0xff]
        %v181 = vld [vmem:[%s178 + $0x8] sm:$0xff]
        %v182 = vld [vmem:[%s178 + $0x10] sm:$0xff]
        %v183 = vld [vmem:[%s178 + $0x18] sm:$0xff]
        %v184 = vld [vmem:[%s178 + $0x20] sm:$0xff]
        %v185 = vld [vmem:[%s178 + $0x28] sm:$0xff]
        %v186 = vld [vmem:[%s178 + $0x30] sm:$0xff]
        %v187 = vld [vmem:[%s178 + $0x38] sm:$0xff]
        %v188 = vld [vmem:[%s178 + $0x40] sm:$0xff]
        %v189 = vld [vmem:[%s178 + $0x48] sm:$0xff]
        %v190 = vld [vmem:[%s178 + $0x50] sm:$0xff]
        %v191 = vld [vmem:[%s178 + $0x58] sm:$0xff]
        %v192 = vld [vmem:[%s178 + $0x60] sm:$0xff]
        %v193 = vld [vmem:[%s178 + $0x68] sm:$0xff]
        %v194 = vld [vmem:[%s178 + $0x70] sm:$0xff]
        %v195 = vld [vmem:[%s178 + $0x78] sm:$0xff]
        %v196 = vld [vmem:[%s178 + $0x80] sm:$0xff]
        %v197 = vld [vmem:[%s178 + $0x88] sm:$0xff]
        %v198 = vld [vmem:[%s178 + $0x90] sm:$0xff]
        %v199 = vld [vmem:[%s178 + $0x98] sm:$0xff]
        %v200 = vld [vmem:[%s178 + $0xa0] sm:$0xff]
        %v201 = vld [vmem:[%s178 + $0xa8] sm:$0xff]
        %v202 = vld [vmem:[%s178 + $0xb0] sm:$0xff]
        %v203 = vld [vmem:[%s178 + $0xb8] sm:$0xff]
        %v204 = vld [vmem:[%s178 + $0xc0] sm:$0xff]
        %v205 = vld [vmem:[%s178 + $0xc8] sm:$0xff]
        %v206 = vld [vmem:[%s178 + $0xd0] sm:$0xff]
        %v207 = vld [vmem:[%s178 + $0xd8] sm:$0xff]
        %v208 = vld [vmem:[%s178 + $0xe0] sm:$0xff]
        %v209 = vld [vmem:[%s178 + $0xe8] sm:$0xff]
        %v210 = vld [vmem:[%s178 + $0xf0] sm:$0xff]
        %v211 = vld [vmem:[%s178 + $0xf8] sm:$0xff]
        %v212 = vld [vmem:[%s178 + $0x100] sm:$0xff]
        %v213 = vld [vmem:[%s178 + $0x108] sm:$0xff]
        %v214 = vld [vmem:[%s178 + $0x110] sm:$0xff]
        %v215 = vld [vmem:[%s178 + $0x118] sm:$0xff]
        %v216 = vld [vmem:[%s178 + $0x120] sm:$0xff]
        %v217 = vld [vmem:[%s178 + $0x128] sm:$0xff]
        %v218 = vld [vmem:[%s178 + $0x130] sm:$0xff]
        %v219 = vld [vmem:[%s178 + $0x138] sm:$0xff]
        %v220 = vld [vmem:[%s178 + $0x140] sm:$0xff]
        %v221 = vld [vmem:[%s178 + $0x148] sm:$0xff]
        %v222 = vld [vmem:[%s178 + $0x150] sm:$0xff]
        %v223 = vld [vmem:[%s178 + $0x158] sm:$0xff]
        %v224 = vld [vmem:[%s178 + $0x160] sm:$0xff]
        %v225 = vld [vmem:[%s178 + $0x168] sm:$0xff]
        %v226 = vld [vmem:[%s178 + $0x170] sm:$0xff]
        %v227 = vld [vmem:[%s178 + $0x178] sm:$0xff]
        %v228 = vld [vmem:[%s178 + $0x180] sm:$0xff]
        %v229 = vld [vmem:[%s178 + $0x188] sm:$0xff]
        %v230 = vld [vmem:[%s178 + $0x190] sm:$0xff]
        %v231 = vld [vmem:[%s178 + $0x198] sm:$0xff]
        %v232 = vld [vmem:[%s178 + $0x1a0] sm:$0xff]
        %v233 = vld [vmem:[%s178 + $0x1a8] sm:$0xff]
        %v234 = vld [vmem:[%s178 + $0x1b0] sm:$0xff]
        %v235 = vld [vmem:[%s178 + $0x1b8] sm:$0xff]
        %v236 = vld [vmem:[%s178 + $0x1c0] sm:$0xff]
        %v237 = vld [vmem:[%s178 + $0x1c8] sm:$0xff]
        %v238 = vld [vmem:[%s178 + $0x1d0] sm:$0xff]
        %v239 = vld [vmem:[%s178 + $0x1d8] sm:$0xff]
        %v240 = vld [vmem:[%s178 + $0x1e0] sm:$0xff]
        %v241 = vld [vmem:[%s178 + $0x1e8] sm:$0xff]
        %v242 = vld [vmem:[%s178 + $0x1f0] sm:$0xff]
        %v243 = vld [vmem:[%s178 + $0x1f8] sm:$0xff]
        %v244 = vld [vmem:[%s178 + $0x200] sm:$0xff]
        %v245 = vld [vmem:[%s178 + $0x208] sm:$0xff]
        %v246 = vld [vmem:[%s178 + $0x210] sm:$0xff]
        %v247 = vld [vmem:[%s178 + $0x218] sm:$0xff]
        %v248 = vld [vmem:[%s178 + $0x220] sm:$0xff]
        %v249 = vld [vmem:[%s178 + $0x228] sm:$0xff]
        %v250 = vld [vmem:[%s178 + $0x230] sm:$0xff]
        %v251 = vld [vmem:[%s178 + $0x238] sm:$0xff]
        %v252 = vld [vmem:[%s178 + $0x240] sm:$0xff]
        %v253 = vld [vmem:[%s178 + $0x248] sm:$0xff]
        %v254 = vld [vmem:[%s178 + $0x250] sm:$0xff]
        %v255 = vld [vmem:[%s178 + $0x258] sm:$0xff]
        %v256 = vld [vmem:[%s178 + $0x260] sm:$0xff]
        %v257 = vld [vmem:[%s178 + $0x268] sm:$0xff]
        %v258 = vld [vmem:[%s178 + $0x270] sm:$0xff]
        %v259 = vld [vmem:[%s178 + $0x278] sm:$0xff]
        %v260 = vld [vmem:[%s178 + $0x280] sm:$0xff]
        %v261 = vld [vmem:[%s178 + $0x288] sm:$0xff]
        %v262 = vld [vmem:[%s178 + $0x290] sm:$0xff]
        %v263 = vld [vmem:[%s178 + $0x298] sm:$0xff]
        %v264 = vld [vmem:[%s178 + $0x2a0] sm:$0xff]
        %v265 = vld [vmem:[%s178 + $0x2a8] sm:$0xff]
        %v266 = vld [vmem:[%s178 + $0x2b0] sm:$0xff]
        %v267 = vld [vmem:[%s178 + $0x2b8] sm:$0xff]
        %v268 = vld [vmem:[%s178 + $0x2c0] sm:$0xff]
        %v269 = vld [vmem:[%s178 + $0x2c8] sm:$0xff]
        %v270 = vld [vmem:[%s178 + $0x2d0] sm:$0xff]
        %v271 = vld [vmem:[%s178 + $0x2d8] sm:$0xff]
        %v272 = vld [vmem:[%s178 + $0x2e0] sm:$0xff]
        %v273 = vld [vmem:[%s178 + $0x2e8] sm:$0xff]
        %v274 = vld [vmem:[%s178 + $0x2f0] sm:$0xff]
        %v275 = vld [vmem:[%s178 + $0x2f8] sm:$0xff]
        %v276 = vld [vmem:[%s178 + $0x300] sm:$0xff]
        %v277 = vld [vmem:[%s178 + $0x308] sm:$0xff]
        %v278 = vld [vmem:[%s178 + $0x310] sm:$0xff]
        %v279 = vld [vmem:[%s178 + $0x318] sm:$0xff]
        %v280 = vld [vmem:[%s178 + $0x320] sm:$0xff]
        %v281 = vld [vmem:[%s178 + $0x328] sm:$0xff]
        %v282 = vld [vmem:[%s178 + $0x330] sm:$0xff]
        %v283 = vld [vmem:[%s178 + $0x338] sm:$0xff]
        %v284 = vld [vmem:[%s178 + $0x340] sm:$0xff]
        %v285 = vld [vmem:[%s178 + $0x348] sm:$0xff]
        %v286 = vld [vmem:[%s178 + $0x350] sm:$0xff]
        %v287 = vld [vmem:[%s178 + $0x358] sm:$0xff]
        %v288 = vld [vmem:[%s178 + $0x360] sm:$0xff]
        %v289 = vld [vmem:[%s178 + $0x368] sm:$0xff]
        %v290 = vld [vmem:[%s178 + $0x370] sm:$0xff]
        %v291 = vld [vmem:[%s178 + $0x378] sm:$0xff]
        %v292 = vld [vmem:[%s178 + $0x380] sm:$0xff]
        %v293 = vld [vmem:[%s178 + $0x388] sm:$0xff]
        %v294 = vld [vmem:[%s178 + $0x390] sm:$0xff]
        %v295 = vld [vmem:[%s178 + $0x398] sm:$0xff]
        %v296 = vld [vmem:[%s178 + $0x3a0] sm:$0xff]
        %v297 = vld [vmem:[%s178 + $0x3a8] sm:$0xff]
        %v298 = vld [vmem:[%s178 + $0x3b0] sm:$0xff]
        %v299 = vld [vmem:[%s178 + $0x3b8] sm:$0xff]
        %v300 = vld [vmem:[%s178 + $0x3c0] sm:$0xff]
        %v301 = vld [vmem:[%s178 + $0x3c8] sm:$0xff]
        %v302 = vld [vmem:[%s178 + $0x3d0] sm:$0xff]
        %v303 = vld [vmem:[%s178 + $0x3d8] sm:$0xff]
        %v304 = vld [vmem:[%s178 + $0x3e0] sm:$0xff]
        %v305 = vld [vmem:[%s178 + $0x3e8] sm:$0xff]
        %v306 = vld [vmem:[%s178 + $0x3f0] sm:$0xff]
        %v307 = vld [vmem:[%s178 + $0x3f8] sm:$0xff]
        %v308 = vld [vmem:[%s1] sm:$0xff]
        %v309 = vld [vmem:[%s1 + $0x8] sm:$0xff]
        %vm310 = vcmask 130048
        %v312 = vsel %vm310, %v180, 0
        %v315 = vsel %vm310, %v181, 0
        %v318 = vsel %vm310, %v182, 0
        %v321 = vsel %vm310, %v183, 0
        %v324 = vsel %vm310, %v184, 0
        %v327 = vsel %vm310, %v185, 0
        %v330 = vsel %vm310, %v186, 0
        %v333 = vsel %vm310, %v187, 0
        %v336 = vsel %vm310, %v188, 0
        %v339 = vsel %vm310, %v189, 0
        %v342 = vsel %vm310, %v190, 0
        %v345 = vsel %vm310, %v191, 0
        %v348 = vsel %vm310, %v192, 0
        %v351 = vsel %vm310, %v193, 0
        %v354 = vsel %vm310, %v194, 0
        %v357 = vsel %vm310, %v195, 0
        %v360 = vsel %vm310, %v196, 0
        %v363 = vsel %vm310, %v197, 0
        %v366 = vsel %vm310, %v198, 0
        %v369 = vsel %vm310, %v199, 0
        %v372 = vsel %vm310, %v200, 0
        %v375 = vsel %vm310, %v201, 0
        %v378 = vsel %vm310, %v202, 0
        %v381 = vsel %vm310, %v203, 0
        %v384 = vsel %vm310, %v204, 0
        %v387 = vsel %vm310, %v205, 0
        %v390 = vsel %vm310, %v206, 0
        %v393 = vsel %vm310, %v207, 0
        %v396 = vsel %vm310, %v208, 0
        %v399 = vsel %vm310, %v209, 0
        %v402 = vsel %vm310, %v210, 0
        %v405 = vsel %vm310, %v211, 0
        %v408 = vsel %vm310, %v212, 0
        %v411 = vsel %vm310, %v213, 0
        %v414 = vsel %vm310, %v214, 0
        %v417 = vsel %vm310, %v215, 0
        %v420 = vsel %vm310, %v216, 0
        %v423 = vsel %vm310, %v217, 0
        %v426 = vsel %vm310, %v218, 0
        %v429 = vsel %vm310, %v219, 0
        %v432 = vsel %vm310, %v220, 0
        %v435 = vsel %vm310, %v221, 0
        %v438 = vsel %vm310, %v222, 0
        %v441 = vsel %vm310, %v223, 0
        %v444 = vsel %vm310, %v224, 0
        %v447 = vsel %vm310, %v225, 0
        %v450 = vsel %vm310, %v226, 0
        %v453 = vsel %vm310, %v227, 0
        %v456 = vsel %vm310, %v228, 0
        %v459 = vsel %vm310, %v229, 0
        %v462 = vsel %vm310, %v230, 0
        %v465 = vsel %vm310, %v231, 0
        %v468 = vsel %vm310, %v232, 0
        %v471 = vsel %vm310, %v233, 0
        %v474 = vsel %vm310, %v234, 0
        %v477 = vsel %vm310, %v235, 0
        %v480 = vsel %vm310, %v236, 0
        %v483 = vsel %vm310, %v237, 0
        %v486 = vsel %vm310, %v238, 0
        %v489 = vsel %vm310, %v239, 0
        %v492 = vsel %vm310, %v240, 0
        %v495 = vsel %vm310, %v241, 0
        %v498 = vsel %vm310, %v242, 0
        %v501 = vsel %vm310, %v243, 0
        %v504 = vsel %vm310, %v244, 0
        %v507 = vsel %vm310, %v245, 0
        %v510 = vsel %vm310, %v246, 0
        %v513 = vsel %vm310, %v247, 0
        %v516 = vsel %vm310, %v248, 0
        %v519 = vsel %vm310, %v249, 0
        %v522 = vsel %vm310, %v250, 0
        %v525 = vsel %vm310, %v251, 0
        %v528 = vsel %vm310, %v252, 0
        %v531 = vsel %vm310, %v253, 0
        %v534 = vsel %vm310, %v254, 0
        %v537 = vsel %vm310, %v255, 0
        %v540 = vsel %vm310, %v256, 0
        %v543 = vsel %vm310, %v257, 0
        %v546 = vsel %vm310, %v258, 0
        %v549 = vsel %vm310, %v259, 0
        %v552 = vsel %vm310, %v260, 0
        %v555 = vsel %vm310, %v261, 0
        %v558 = vsel %vm310, %v262, 0
        %v561 = vsel %vm310, %v263, 0
        %v564 = vsel %vm310, %v264, 0
        %v567 = vsel %vm310, %v265, 0
        %v570 = vsel %vm310, %v266, 0
        %v573 = vsel %vm310, %v267, 0
        %v576 = vsel %vm310, %v268, 0
        %v579 = vsel %vm310, %v269, 0
        %v582 = vsel %vm310, %v270, 0
        %v585 = vsel %vm310, %v271, 0
        %v588 = vsel %vm310, %v272, 0
        %v591 = vsel %vm310, %v273, 0
        %v594 = vsel %vm310, %v274, 0
        %v597 = vsel %vm310, %v275, 0
        %v600 = vsel %vm310, %v276, 0
        %v603 = vsel %vm310, %v277, 0
        %v606 = vsel %vm310, %v278, 0
        %v609 = vsel %vm310, %v279, 0
        %v612 = vsel %vm310, %v280, 0
        %v615 = vsel %vm310, %v281, 0
        %v618 = vsel %vm310, %v282, 0
        %v621 = vsel %vm310, %v283, 0
        %v624 = vsel %vm310, %v284, 0
        %v627 = vsel %vm310, %v285, 0
        %v630 = vsel %vm310, %v286, 0
        %v633 = vsel %vm310, %v287, 0
        %v636 = vsel %vm310, %v288, 0
        %v639 = vsel %vm310, %v289, 0
        %v642 = vsel %vm310, %v290, 0
        %v645 = vsel %vm310, %v291, 0
        %v648 = vsel %vm310, %v292, 0
        %v651 = vsel %vm310, %v293, 0
        %v654 = vsel %vm310, %v294, 0
        %v657 = vsel %vm310, %v295, 0
        %v660 = vsel %vm310, %v296, 0
        %v663 = vsel %vm310, %v297, 0
        %v666 = vsel %vm310, %v298, 0
        %v669 = vsel %vm310, %v299, 0
        %v672 = vsel %vm310, %v300, 0
        %v675 = vsel %vm310, %v301, 0
        %v678 = vsel %vm310, %v302, 0
        %v681 = vsel %vm310, %v303, 0
        %v684 = vsel %vm310, %v304, 0
        %v687 = vsel %vm310, %v305, 0
        %v690 = vsel %vm310, %v306, 0
        %v693 = vsel %vm310, %v307, 0
        %695 = vmatprep.subr.mxu0 0.0
        %696 = vmatpush1.msra.mxu0 %v308
        %697 = vmatprep.subr.mxu0 0.0
        %698 = vmatpush1.msra.mxu0 %v309
        %699 = vmatprep.subr.mxu0 0.0
        %700 = vmatpush1.msra.mxu0 0.0
        %701 = vmatprep.subr.mxu0 0.0
        %702 = vmatpush1.msra.mxu0 0.0
        %703 = vmatprep.subr.mxu0 0.0
        %704 = vmatpush1.msra.mxu0 0.0
        %705 = vmatprep.subr.mxu0 0.0
        %706 = vmatpush1.msra.mxu0 0.0
        %707 = vmatprep.subr.mxu0 0.0
        %708 = vmatpush1.msra.mxu0 0.0
        %709 = vmatprep.subr.mxu0 0.0
        %710 = vmatpush1.msra.mxu0 0.0
        %711 = vmatprep.subr.mxu0 0.0
        %712 = vmatpush1.msra.mxu0 0.0
        %713 = vmatprep.subr.mxu0 0.0
        %714 = vmatpush1.msra.mxu0 0.0
        %715 = vmatprep.subr.mxu0 0.0
        %716 = vmatpush1.msra.mxu0 0.0
        %717 = vmatprep.subr.mxu0 0.0
        %718 = vmatpush1.msra.mxu0 0.0
        %719 = vmatprep.subr.mxu0 0.0
        %720 = vmatpush1.msra.mxu0 0.0
        %721 = vmatprep.subr.mxu0 0.0
        %722 = vmatpush1.msra.mxu0 0.0
        %723 = vmatprep.subr.mxu0 0.0
        %724 = vmatpush1.msra.mxu0 0.0
        %725 = vmatprep.subr.mxu0 0.0
        %726 = vmatpush1.msra.mxu0 0.0
        %727 = vmatprep.subr.mxu0 0.0
        %728 = vmatpush1.msra.mxu0 0.0
        %729 = vmatprep.subr.mxu0 0.0
        %730 = vmatpush1.msra.mxu0 0.0
        %731 = vmatprep.subr.mxu0 0.0
        %732 = vmatpush1.msra.mxu0 0.0
        %733 = vmatprep.subr.mxu0 0.0
        %734 = vmatpush1.msra.mxu0 0.0
        %735 = vmatprep.subr.mxu0 0.0
        %736 = vmatpush1.msra.mxu0 0.0
        %737 = vmatprep.subr.mxu0 0.0
        %738 = vmatpush1.msra.mxu0 0.0
        %739 = vmatprep.subr.mxu0 0.0
        %740 = vmatpush1.msra.mxu0 0.0
        %741 = vmatprep.subr.mxu0 0.0
        %742 = vmatpush1.msra.mxu0 0.0
        %743 = vmatprep.subr.mxu0 0.0
        %744 = vmatpush1.msra.mxu0 0.0
        %745 = vmatprep.subr.mxu0 0.0
        %746 = vmatpush1.msra.mxu0 0.0
        %747 = vmatprep.subr.mxu0 0.0
        %748 = vmatpush1.msra.mxu0 0.0
        %749 = vmatprep.subr.mxu0 0.0
        %750 = vmatpush1.msra.mxu0 0.0
        %751 = vmatprep.subr.mxu0 0.0
        %752 = vmatpush1.msra.mxu0 0.0
        %753 = vmatprep.subr.mxu0 0.0
        %754 = vmatpush1.msra.mxu0 0.0
        %755 = vmatprep.subr.mxu0 0.0
        %756 = vmatpush1.msra.mxu0 0.0
        %757 = vmatprep.subr.mxu0 0.0
        %758 = vmatpush1.msra.mxu0 0.0
        %759 = vmatprep.mubr.f32.mxu0 0.0
        %760 = vmatmul.mubr.f32.gmra.mrb[0].mxu0 %v312
        %v761 = vpop.f32.mrb[0].mxu0
        %v762 = vadd.f32 0.0, %v761
        %v763 = vpop.f32.mrb[0].mxu0
        %764 = vmatprep.mubr.f32.mxu0 0.0
        %765 = vmatmul.mubr.f32.gmra.mrb[0].mxu0 %v315
        %v766 = vpop.f32.mrb[0].mxu0
        %v767 = vadd.f32 0.0, %v766
        %v768 = vpop.f32.mrb[0].mxu0
        %769 = vmatprep.mubr.f32.mxu0 0.0
        %770 = vmatmul.mubr.f32.gmra.mrb[0].mxu0 %v318
        %v771 = vpop.f32.mrb[0].mxu0
        %v772 = vadd.f32 0.0, %v771
        %v773 = vpop.f32.mrb[0].mxu0
        %774 = vmatprep.mubr.f32.mxu0 0.0
        %775 = vmatmul.mubr.f32.gmra.mrb[0].mxu0 %v321
        %v776 = vpop.f32.mrb[0].mxu0
        %v777 = vadd.f32 0.0, %v776
        %v778 = vpop.f32.mrb[0].mxu0
        %779 = vmatprep.mubr.f32.mxu0 0.0
        %780 = vmatmul.mubr.f32.gmra.mrb[0].mxu0 %v324
        %v781 = vpop.f32.mrb[0].mxu0
        %v782 = vadd.f32 0.0, %v781
        %v783 = vpop.f32.mrb[0].mxu0
        %784 = vmatprep.mubr.f32.mxu0 0.0
        %785 = vmatmul.mubr.f32.gmra.mrb[0].mxu0 %v327
        %v786 = vpop.f32.mrb[0].mxu0
        %v787 = vadd.f32 0.0, %v786
        %v788 = vpop.f32.mrb[0].mxu0
        %789 = vmatprep.mubr.f32.mxu0 0.0
        %790 = vmatmul.mubr.f32.gmra.mrb[0].mxu0 %v330
        %v791 = vpop.f32.mrb[0].mxu0
        %v792 = vadd.f32 0.0, %v791
        %v793 = vpop.f32.mrb[0].mxu0
        %794 = vmatprep.mubr.f32.mxu0 0.0
        %795 = vmatmul.mubr.f32.gmra.mrb[0].mxu0 %v333
        %v796 = vpop.f32.mrb[0].mxu0
        %v797 = vadd.f32 0.0, %v796
        %v798 = vpop.f32.mrb[0].mxu0
        %799 = vmatprep.mubr.f32.mxu0 0.0
        %800 = vmatmul.mubr.f32.gmra.mrb[0].mxu0 %v336
        %v801 = vpop.f32.mrb[0].mxu0
        %v802 = vadd.f32 0.0, %v801
        %v803 = vpop.f32.mrb[0].mxu0
        %804 = vmatprep.mubr.f32.mxu0 0.0
        %805 = vmatmul.mubr.f32.gmra.mrb[0].mxu0 %v339
        %v806 = vpop.f32.mrb[0].mxu0
        %v807 = vadd.f32 0.0, %v806
        %v808 = vpop.f32.mrb[0].mxu0
        %809 = vmatprep.mubr.f32.mxu0 0.0
        %810 = vmatmul.mubr.f32.gmra.mrb[0].mxu0 %v342
        %v811 = vpop.f32.mrb[0].mxu0
        %v812 = vadd.f32 0.0, %v811
        %v813 = vpop.f32.mrb[0].mxu0
        %814 = vmatprep.mubr.f32.mxu0 0.0
        %815 = vmatmul.mubr.f32.gmra.mrb[0].mxu0 %v345
        %v816 = vpop.f32.mrb[0].mxu0
        %v817 = vadd.f32 0.0, %v816
        %v818 = vpop.f32.mrb[0].mxu0
        %819 = vmatprep.mubr.f32.mxu0 0.0
        %820 = vmatmul.mubr.f32.gmra.mrb[0].mxu0 %v348
        %v821 = vpop.f32.mrb[0].mxu0
        %v822 = vadd.f32 0.0, %v821
        %v823 = vpop.f32.mrb[0].mxu0
        %824 = vmatprep.mubr.f32.mxu0 0.0
        %825 = vmatmul.mubr.f32.gmra.mrb[0].mxu0 %v351
        %v826 = vpop.f32.mrb[0].mxu0
        %v827 = vadd.f32 0.0, %v826
        %v828 = vpop.f32.mrb[0].mxu0
        %829 = vmatprep.mubr.f32.mxu0 0.0
        %830 = vmatmul.mubr.f32.gmra.mrb[0].mxu0 %v354
        %v831 = vpop.f32.mrb[0].mxu0
        %v832 = vadd.f32 0.0, %v831
        %v833 = vpop.f32.mrb[0].mxu0
        %834 = vmatprep.mubr.f32.mxu0 0.0
        %835 = vmatmul.mubr.f32.gmra.mrb[0].mxu0 %v357
        %v836 = vpop.f32.mrb[0].mxu0
        %v837 = vadd.f32 0.0, %v836
        %v838 = vpop.f32.mrb[0].mxu0
        %839 = vmatprep.mubr.f32.mxu0 0.0
        %840 = vmatmul.mubr.f32.gmra.mrb[0].mxu0 %v360
        %v841 = vpop.f32.mrb[0].mxu0
        %v842 = vadd.f32 0.0, %v841
        %v843 = vpop.f32.mrb[0].mxu0
        %844 = vmatprep.mubr.f32.mxu0 0.0
        %845 = vmatmul.mubr.f32.gmra.mrb[0].mxu0 %v363
        %v846 = vpop.f32.mrb[0].mxu0
        %v847 = vadd.f32 0.0, %v846
        %v848 = vpop.f32.mrb[0].mxu0
        %849 = vmatprep.mubr.f32.mxu0 0.0
        %850 = vmatmul.mubr.f32.gmra.mrb[0].mxu0 %v366
        %v851 = vpop.f32.mrb[0].mxu0
        %v852 = vadd.f32 0.0, %v851
        %v853 = vpop.f32.mrb[0].mxu0
        %854 = vmatprep.mubr.f32.mxu0 0.0
        %855 = vmatmul.mubr.f32.gmra.mrb[0].mxu0 %v369
        %v856 = vpop.f32.mrb[0].mxu0
        %v857 = vadd.f32 0.0, %v856
        %v858 = vpop.f32.mrb[0].mxu0
        %859 = vmatprep.mubr.f32.mxu0 0.0
        %860 = vmatmul.mubr.f32.gmra.mrb[0].mxu0 %v372
        %v861 = vpop.f32.mrb[0].mxu0
        %v862 = vadd.f32 0.0, %v861
        %v863 = vpop.f32.mrb[0].mxu0
        %864 = vmatprep.mubr.f32.mxu0 0.0
        %865 = vmatmul.mubr.f32.gmra.mrb[0].mxu0 %v375
        %v866 = vpop.f32.mrb[0].mxu0
        %v867 = vadd.f32 0.0, %v866
        %v868 = vpop.f32.mrb[0].mxu0
        %869 = vmatprep.mubr.f32.mxu0 0.0
        %870 = vmatmul.mubr.f32.gmra.mrb[0].mxu0 %v378
        %v871 = vpop.f32.mrb[0].mxu0
        %v872 = vadd.f32 0.0, %v871
        %v873 = vpop.f32.mrb[0].mxu0
        %874 = vmatprep.mubr.f32.mxu0 0.0
        %875 = vmatmul.mubr.f32.gmra.mrb[0].mxu0 %v381
        %v876 = vpop.f32.mrb[0].mxu0
        %v877 = vadd.f32 0.0, %v876
        %v878 = vpop.f32.mrb[0].mxu0
        %879 = vmatprep.mubr.f32.mxu0 0.0
        %880 = vmatmul.mubr.f32.gmra.mrb[0].mxu0 %v384
        %v881 = vpop.f32.mrb[0].mxu0
        %v882 = vadd.f32 0.0, %v881
        %v883 = vpop.f32.mrb[0].mxu0
        %884 = vmatprep.mubr.f32.mxu0 0.0
        %885 = vmatmul.mubr.f32.gmra.mrb[0].mxu0 %v387
        %v886 = vpop.f32.mrb[0].mxu0
        %v887 = vadd.f32 0.0, %v886
        %v888 = vpop.f32.mrb[0].mxu0
        %889 = vmatprep.mubr.f32.mxu0 0.0
        %890 = vmatmul.mubr.f32.gmra.mrb[0].mxu0 %v390
        %v891 = vpop.f32.mrb[0].mxu0
        %v892 = vadd.f32 0.0, %v891
        %v893 = vpop.f32.mrb[0].mxu0
        %894 = vmatprep.mubr.f32.mxu0 0.0
        %895 = vmatmul.mubr.f32.gmra.mrb[0].mxu0 %v393
        %v896 = vpop.f32.mrb[0].mxu0
        %v897 = vadd.f32 0.0, %v896
        %v898 = vpop.f32.mrb[0].mxu0
        %899 = vmatprep.mubr.f32.mxu0 0.0
        %900 = vmatmul.mubr.f32.gmra.mrb[0].mxu0 %v396
        %v901 = vpop.f32.mrb[0].mxu0
        %v902 = vadd.f32 0.0, %v901
        %v903 = vpop.f32.mrb[0].mxu0
        %904 = vmatprep.mubr.f32.mxu0 0.0
        %905 = vmatmul.mubr.f32.gmra.mrb[0].mxu0 %v399
        %v906 = vpop.f32.mrb[0].mxu0
        %v907 = vadd.f32 0.0, %v906
        %v908 = vpop.f32.mrb[0].mxu0
        %909 = vmatprep.mubr.f32.mxu0 0.0
        %910 = vmatmul.mubr.f32.gmra.mrb[0].mxu0 %v402
        %v911 = vpop.f32.mrb[0].mxu0
        %v912 = vadd.f32 0.0, %v911
        %v913 = vpop.f32.mrb[0].mxu0
        %914 = vmatprep.mubr.f32.mxu0 0.0
        %915 = vmatmul.mubr.f32.gmra.mrb[0].mxu0 %v405
        %v916 = vpop.f32.mrb[0].mxu0
        %v917 = vadd.f32 0.0, %v916
        %v918 = vpop.f32.mrb[0].mxu0
        %919 = vmatprep.mubr.f32.mxu0 0.0
        %920 = vmatmul.mubr.f32.gmra.mrb[0].mxu0 %v408
        %v921 = vpop.f32.mrb[0].mxu0
        %v922 = vadd.f32 0.0, %v921
        %v923 = vpop.f32.mrb[0].mxu0
        %924 = vmatprep.mubr.f32.mxu0 0.0
        %925 = vmatmul.mubr.f32.gmra.mrb[0].mxu0 %v411
        %v926 = vpop.f32.mrb[0].mxu0
        %v927 = vadd.f32 0.0, %v926
        %v928 = vpop.f32.mrb[0].mxu0
        %929 = vmatprep.mubr.f32.mxu0 0.0
        %930 = vmatmul.mubr.f32.gmra.mrb[0].mxu0 %v414
        %v931 = vpop.f32.mrb[0].mxu0
        %v932 = vadd.f32 0.0, %v931
        %v933 = vpop.f32.mrb[0].mxu0
        %934 = vmatprep.mubr.f32.mxu0 0.0
        %935 = vmatmul.mubr.f32.gmra.mrb[0].mxu0 %v417
        %v936 = vpop.f32.mrb[0].mxu0
        %v937 = vadd.f32 0.0, %v936
        %v938 = vpop.f32.mrb[0].mxu0
        %939 = vmatprep.mubr.f32.mxu0 0.0
        %940 = vmatmul.mubr.f32.gmra.mrb[0].mxu0 %v420
        %v941 = vpop.f32.mrb[0].mxu0
        %v942 = vadd.f32 0.0, %v941
        %v943 = vpop.f32.mrb[0].mxu0
        %944 = vmatprep.mubr.f32.mxu0 0.0
        %945 = vmatmul.mubr.f32.gmra.mrb[0].mxu0 %v423
        %v946 = vpop.f32.mrb[0].mxu0
        %v947 = vadd.f32 0.0, %v946
        %v948 = vpop.f32.mrb[0].mxu0
        %949 = vmatprep.mubr.f32.mxu0 0.0
        %950 = vmatmul.mubr.f32.gmra.mrb[0].mxu0 %v426
        %v951 = vpop.f32.mrb[0].mxu0
        %v952 = vadd.f32 0.0, %v951
        %v953 = vpop.f32.mrb[0].mxu0
        %954 = vmatprep.mubr.f32.mxu0 0.0
        %955 = vmatmul.mubr.f32.gmra.mrb[0].mxu0 %v429
        %v956 = vpop.f32.mrb[0].mxu0
        %v957 = vadd.f32 0.0, %v956
        %v958 = vpop.f32.mrb[0].mxu0
        %959 = vmatprep.mubr.f32.mxu0 0.0
        %960 = vmatmul.mubr.f32.gmra.mrb[0].mxu0 %v432
        %v961 = vpop.f32.mrb[0].mxu0
        %v962 = vadd.f32 0.0, %v961
        %v963 = vpop.f32.mrb[0].mxu0
        %964 = vmatprep.mubr.f32.mxu0 0.0
        %965 = vmatmul.mubr.f32.gmra.mrb[0].mxu0 %v435
        %v966 = vpop.f32.mrb[0].mxu0
        %v967 = vadd.f32 0.0, %v966
        %v968 = vpop.f32.mrb[0].mxu0
        %969 = vmatprep.mubr.f32.mxu0 0.0
        %970 = vmatmul.mubr.f32.gmra.mrb[0].mxu0 %v438
        %v971 = vpop.f32.mrb[0].mxu0
        %v972 = vadd.f32 0.0, %v971
        %v973 = vpop.f32.mrb[0].mxu0
        %974 = vmatprep.mubr.f32.mxu0 0.0
        %975 = vmatmul.mubr.f32.gmra.mrb[0].mxu0 %v441
        %v976 = vpop.f32.mrb[0].mxu0
        %v977 = vadd.f32 0.0, %v976
        %v978 = vpop.f32.mrb[0].mxu0
        %979 = vmatprep.mubr.f32.mxu0 0.0
        %980 = vmatmul.mubr.f32.gmra.mrb[0].mxu0 %v444
        %v981 = vpop.f32.mrb[0].mxu0
        %v982 = vadd.f32 0.0, %v981
        %v983 = vpop.f32.mrb[0].mxu0
        %984 = vmatprep.mubr.f32.mxu0 0.0
        %985 = vmatmul.mubr.f32.gmra.mrb[0].mxu0 %v447
        %v986 = vpop.f32.mrb[0].mxu0
        %v987 = vadd.f32 0.0, %v986
        %v988 = vpop.f32.mrb[0].mxu0
        %989 = vmatprep.mubr.f32.mxu0 0.0
        %990 = vmatmul.mubr.f32.gmra.mrb[0].mxu0 %v450
        %v991 = vpop.f32.mrb[0].mxu0
        %v992 = vadd.f32 0.0, %v991
        %v993 = vpop.f32.mrb[0].mxu0
        %994 = vmatprep.mubr.f32.mxu0 0.0
        %995 = vmatmul.mubr.f32.gmra.mrb[0].mxu0 %v453
        %v996 = vpop.f32.mrb[0].mxu0
        %v997 = vadd.f32 0.0, %v996
        %v998 = vpop.f32.mrb[0].mxu0
        %999 = vmatprep.mubr.f32.mxu0 0.0
        %1000 = vmatmul.mubr.f32.gmra.mrb[0].mxu0 %v456
        %v1001 = vpop.f32.mrb[0].mxu0
        %v1002 = vadd.f32 0.0, %v1001
        %v1003 = vpop.f32.mrb[0].mxu0
        %1004 = vmatprep.mubr.f32.mxu0 0.0
        %1005 = vmatmul.mubr.f32.gmra.mrb[0].mxu0 %v459
        %v1006 = vpop.f32.mrb[0].mxu0
        %v1007 = vadd.f32 0.0, %v1006
        %v1008 = vpop.f32.mrb[0].mxu0
        %1009 = vmatprep.mubr.f32.mxu0 0.0
        %1010 = vmatmul.mubr.f32.gmra.mrb[0].mxu0 %v462
        %v1011 = vpop.f32.mrb[0].mxu0
        %v1012 = vadd.f32 0.0, %v1011
        %v1013 = vpop.f32.mrb[0].mxu0
        %1014 = vmatprep.mubr.f32.mxu0 0.0
        %1015 = vmatmul.mubr.f32.gmra.mrb[0].mxu0 %v465
        %v1016 = vpop.f32.mrb[0].mxu0
        %v1017 = vadd.f32 0.0, %v1016
        %v1018 = vpop.f32.mrb[0].mxu0
        %1019 = vmatprep.mubr.f32.mxu0 0.0
        %1020 = vmatmul.mubr.f32.gmra.mrb[0].mxu0 %v468
        %v1021 = vpop.f32.mrb[0].mxu0
        %v1022 = vadd.f32 0.0, %v1021
        %v1023 = vpop.f32.mrb[0].mxu0
        %1024 = vmatprep.mubr.f32.mxu0 0.0
        %1025 = vmatmul.mubr.f32.gmra.mrb[0].mxu0 %v471
        %v1026 = vpop.f32.mrb[0].mxu0
        %v1027 = vadd.f32 0.0, %v1026
        %v1028 = vpop.f32.mrb[0].mxu0
        %1029 = vmatprep.mubr.f32.mxu0 0.0
        %1030 = vmatmul.mubr.f32.gmra.mrb[0].mxu0 %v474
        %v1031 = vpop.f32.mrb[0].mxu0
        %v1032 = vadd.f32 0.0, %v1031
        %v1033 = vpop.f32.mrb[0].mxu0
        %1034 = vmatprep.mubr.f32.mxu0 0.0
        %1035 = vmatmul.mubr.f32.gmra.mrb[0].mxu0 %v477
        %v1036 = vpop.f32.mrb[0].mxu0
        %v1037 = vadd.f32 0.0, %v1036
        %v1038 = vpop.f32.mrb[0].mxu0
        %1039 = vmatprep.mubr.f32.mxu0 0.0
        %1040 = vmatmul.mubr.f32.gmra.mrb[0].mxu0 %v480
        %v1041 = vpop.f32.mrb[0].mxu0
        %v1042 = vadd.f32 0.0, %v1041
        %v1043 = vpop.f32.mrb[0].mxu0
        %1044 = vmatprep.mubr.f32.mxu0 0.0
        %1045 = vmatmul.mubr.f32.gmra.mrb[0].mxu0 %v483
        %v1046 = vpop.f32.mrb[0].mxu0
        %v1047 = vadd.f32 0.0, %v1046
        %v1048 = vpop.f32.mrb[0].mxu0
        %1049 = vmatprep.mubr.f32.mxu0 0.0
        %1050 = vmatmul.mubr.f32.gmra.mrb[0].mxu0 %v486
        %v1051 = vpop.f32.mrb[0].mxu0
        %v1052 = vadd.f32 0.0, %v1051
        %v1053 = vpop.f32.mrb[0].mxu0
        %1054 = vmatprep.mubr.f32.mxu0 0.0
        %1055 = vmatmul.mubr.f32.gmra.mrb[0].mxu0 %v489
        %v1056 = vpop.f32.mrb[0].mxu0
        %v1057 = vadd.f32 0.0, %v1056
        %v1058 = vpop.f32.mrb[0].mxu0
        %1059 = vmatprep.mubr.f32.mxu0 0.0
        %1060 = vmatmul.mubr.f32.gmra.mrb[0].mxu0 %v492
        %v1061 = vpop.f32.mrb[0].mxu0
        %v1062 = vadd.f32 0.0, %v1061
        %v1063 = vpop.f32.mrb[0].mxu0
        %1064 = vmatprep.mubr.f32.mxu0 0.0
        %1065 = vmatmul.mubr.f32.gmra.mrb[0].mxu0 %v495
        %v1066 = vpop.f32.mrb[0].mxu0
        %v1067 = vadd.f32 0.0, %v1066
        %v1068 = vpop.f32.mrb[0].mxu0
        %1069 = vmatprep.mubr.f32.mxu0 0.0
        %1070 = vmatmul.mubr.f32.gmra.mrb[0].mxu0 %v498
        %v1071 = vpop.f32.mrb[0].mxu0
        %v1072 = vadd.f32 0.0, %v1071
        %v1073 = vpop.f32.mrb[0].mxu0
        %1074 = vmatprep.mubr.f32.mxu0 0.0
        %1075 = vmatmul.mubr.f32.gmra.mrb[0].mxu0 %v501
        %v1076 = vpop.f32.mrb[0].mxu0
        %v1077 = vadd.f32 0.0, %v1076
        %v1078 = vpop.f32.mrb[0].mxu0
        %1079 = vmatprep.mubr.f32.mxu0 0.0
        %1080 = vmatmul.mubr.f32.gmra.mrb[0].mxu0 %v504
        %v1081 = vpop.f32.mrb[0].mxu0
        %v1082 = vadd.f32 0.0, %v1081
        %v1083 = vpop.f32.mrb[0].mxu0
        %1084 = vmatprep.mubr.f32.mxu0 0.0
        %1085 = vmatmul.mubr.f32.gmra.mrb[0].mxu0 %v507
        %v1086 = vpop.f32.mrb[0].mxu0
        %v1087 = vadd.f32 0.0, %v1086
        %v1088 = vpop.f32.mrb[0].mxu0
        %1089 = vmatprep.mubr.f32.mxu0 0.0
        %1090 = vmatmul.mubr.f32.gmra.mrb[0].mxu0 %v510
        %v1091 = vpop.f32.mrb[0].mxu0
        %v1092 = vadd.f32 0.0, %v1091
        %v1093 = vpop.f32.mrb[0].mxu0
        %1094 = vmatprep.mubr.f32.mxu0 0.0
        %1095 = vmatmul.mubr.f32.gmra.mrb[0].mxu0 %v513
        %v1096 = vpop.f32.mrb[0].mxu0
        %v1097 = vadd.f32 0.0, %v1096
        %v1098 = vpop.f32.mrb[0].mxu0
        %1099 = vmatprep.mubr.f32.mxu0 0.0
        %1100 = vmatmul.mubr.f32.gmra.mrb[0].mxu0 %v516
        %v1101 = vpop.f32.mrb[0].mxu0
        %v1102 = vadd.f32 0.0, %v1101
        %v1103 = vpop.f32.mrb[0].mxu0
        %1104 = vmatprep.mubr.f32.mxu0 0.0
        %1105 = vmatmul.mubr.f32.gmra.mrb[0].mxu0 %v519
        %v1106 = vpop.f32.mrb[0].mxu0
        %v1107 = vadd.f32 0.0, %v1106
        %v1108 = vpop.f32.mrb[0].mxu0
        %1109 = vmatprep.mubr.f32.mxu0 0.0
        %1110 = vmatmul.mubr.f32.gmra.mrb[0].mxu0 %v522
        %v1111 = vpop.f32.mrb[0].mxu0
        %v1112 = vadd.f32 0.0, %v1111
        %v1113 = vpop.f32.mrb[0].mxu0
        %1114 = vmatprep.mubr.f32.mxu0 0.0
        %1115 = vmatmul.mubr.f32.gmra.mrb[0].mxu0 %v525
        %v1116 = vpop.f32.mrb[0].mxu0
        %v1117 = vadd.f32 0.0, %v1116
        %v1118 = vpop.f32.mrb[0].mxu0
        %1119 = vmatprep.mubr.f32.mxu0 0.0
        %1120 = vmatmul.mubr.f32.gmra.mrb[0].mxu0 %v528
        %v1121 = vpop.f32.mrb[0].mxu0
        %v1122 = vadd.f32 0.0, %v1121
        %v1123 = vpop.f32.mrb[0].mxu0
        %1124 = vmatprep.mubr.f32.mxu0 0.0
        %1125 = vmatmul.mubr.f32.gmra.mrb[0].mxu0 %v531
        %v1126 = vpop.f32.mrb[0].mxu0
        %v1127 = vadd.f32 0.0, %v1126
        %v1128 = vpop.f32.mrb[0].mxu0
        %1129 = vmatprep.mubr.f32.mxu0 0.0
        %1130 = vmatmul.mubr.f32.gmra.mrb[0].mxu0 %v534
        %v1131 = vpop.f32.mrb[0].mxu0
        %v1132 = vadd.f32 0.0, %v1131
        %v1133 = vpop.f32.mrb[0].mxu0
        %1134 = vmatprep.mubr.f32.mxu0 0.0
        %1135 = vmatmul.mubr.f32.gmra.mrb[0].mxu0 %v537
        %v1136 = vpop.f32.mrb[0].mxu0
        %v1137 = vadd.f32 0.0, %v1136
        %v1138 = vpop.f32.mrb[0].mxu0
        %1139 = vmatprep.mubr.f32.mxu0 0.0
        %1140 = vmatmul.mubr.f32.gmra.mrb[0].mxu0 %v540
        %v1141 = vpop.f32.mrb[0].mxu0
        %v1142 = vadd.f32 0.0, %v1141
        %v1143 = vpop.f32.mrb[0].mxu0
        %1144 = vmatprep.mubr.f32.mxu0 0.0
        %1145 = vmatmul.mubr.f32.gmra.mrb[0].mxu0 %v543
        %v1146 = vpop.f32.mrb[0].mxu0
        %v1147 = vadd.f32 0.0, %v1146
        %v1148 = vpop.f32.mrb[0].mxu0
        %1149 = vmatprep.mubr.f32.mxu0 0.0
        %1150 = vmatmul.mubr.f32.gmra.mrb[0].mxu0 %v546
        %v1151 = vpop.f32.mrb[0].mxu0
        %v1152 = vadd.f32 0.0, %v1151
        %v1153 = vpop.f32.mrb[0].mxu0
        %1154 = vmatprep.mubr.f32.mxu0 0.0
        %1155 = vmatmul.mubr.f32.gmra.mrb[0].mxu0 %v549
        %v1156 = vpop.f32.mrb[0].mxu0
        %v1157 = vadd.f32 0.0, %v1156
        %v1158 = vpop.f32.mrb[0].mxu0
        %1159 = vmatprep.mubr.f32.mxu0 0.0
        %1160 = vmatmul.mubr.f32.gmra.mrb[0].mxu0 %v552
        %v1161 = vpop.f32.mrb[0].mxu0
        %v1162 = vadd.f32 0.0, %v1161
        %v1163 = vpop.f32.mrb[0].mxu0
        %1164 = vmatprep.mubr.f32.mxu0 0.0
        %1165 = vmatmul.mubr.f32.gmra.mrb[0].mxu0 %v555
        %v1166 = vpop.f32.mrb[0].mxu0
        %v1167 = vadd.f32 0.0, %v1166
        %v1168 = vpop.f32.mrb[0].mxu0
        %1169 = vmatprep.mubr.f32.mxu0 0.0
        %1170 = vmatmul.mubr.f32.gmra.mrb[0].mxu0 %v558
        %v1171 = vpop.f32.mrb[0].mxu0
        %v1172 = vadd.f32 0.0, %v1171
        %v1173 = vpop.f32.mrb[0].mxu0
        %1174 = vmatprep.mubr.f32.mxu0 0.0
        %1175 = vmatmul.mubr.f32.gmra.mrb[0].mxu0 %v561
        %v1176 = vpop.f32.mrb[0].mxu0
        %v1177 = vadd.f32 0.0, %v1176
        %v1178 = vpop.f32.mrb[0].mxu0
        %1179 = vmatprep.mubr.f32.mxu0 0.0
        %1180 = vmatmul.mubr.f32.gmra.mrb[0].mxu0 %v564
        %v1181 = vpop.f32.mrb[0].mxu0
        %v1182 = vadd.f32 0.0, %v1181
        %v1183 = vpop.f32.mrb[0].mxu0
        %1184 = vmatprep.mubr.f32.mxu0 0.0
        %1185 = vmatmul.mubr.f32.gmra.mrb[0].mxu0 %v567
        %v1186 = vpop.f32.mrb[0].mxu0
        %v1187 = vadd.f32 0.0, %v1186
        %v1188 = vpop.f32.mrb[0].mxu0
        %1189 = vmatprep.mubr.f32.mxu0 0.0
        %1190 = vmatmul.mubr.f32.gmra.mrb[0].mxu0 %v570
        %v1191 = vpop.f32.mrb[0].mxu0
        %v1192 = vadd.f32 0.0, %v1191
        %v1193 = vpop.f32.mrb[0].mxu0
        %1194 = vmatprep.mubr.f32.mxu0 0.0
        %1195 = vmatmul.mubr.f32.gmra.mrb[0].mxu0 %v573
        %v1196 = vpop.f32.mrb[0].mxu0
        %v1197 = vadd.f32 0.0, %v1196
        %v1198 = vpop.f32.mrb[0].mxu0
        %1199 = vmatprep.mubr.f32.mxu0 0.0
        %1200 = vmatmul.mubr.f32.gmra.mrb[0].mxu0 %v576
        %v1201 = vpop.f32.mrb[0].mxu0
        %v1202 = vadd.f32 0.0, %v1201
        %v1203 = vpop.f32.mrb[0].mxu0
        %1204 = vmatprep.mubr.f32.mxu0 0.0
        %1205 = vmatmul.mubr.f32.gmra.mrb[0].mxu0 %v579
        %v1206 = vpop.f32.mrb[0].mxu0
        %v1207 = vadd.f32 0.0, %v1206
        %v1208 = vpop.f32.mrb[0].mxu0
        %1209 = vmatprep.mubr.f32.mxu0 0.0
        %1210 = vmatmul.mubr.f32.gmra.mrb[0].mxu0 %v582
        %v1211 = vpop.f32.mrb[0].mxu0
        %v1212 = vadd.f32 0.0, %v1211
        %v1213 = vpop.f32.mrb[0].mxu0
        %1214 = vmatprep.mubr.f32.mxu0 0.0
        %1215 = vmatmul.mubr.f32.gmra.mrb[0].mxu0 %v585
        %v1216 = vpop.f32.mrb[0].mxu0
        %v1217 = vadd.f32 0.0, %v1216
        %v1218 = vpop.f32.mrb[0].mxu0
        %1219 = vmatprep.mubr.f32.mxu0 0.0
        %1220 = vmatmul.mubr.f32.gmra.mrb[0].mxu0 %v588
        %v1221 = vpop.f32.mrb[0].mxu0
        %v1222 = vadd.f32 0.0, %v1221
        %v1223 = vpop.f32.mrb[0].mxu0
        %1224 = vmatprep.mubr.f32.mxu0 0.0
        %1225 = vmatmul.mubr.f32.gmra.mrb[0].mxu0 %v591
        %v1226 = vpop.f32.mrb[0].mxu0
        %v1227 = vadd.f32 0.0, %v1226
        %v1228 = vpop.f32.mrb[0].mxu0
        %1229 = vmatprep.mubr.f32.mxu0 0.0
        %1230 = vmatmul.mubr.f32.gmra.mrb[0].mxu0 %v594
        %v1231 = vpop.f32.mrb[0].mxu0
        %v1232 = vadd.f32 0.0, %v1231
        %v1233 = vpop.f32.mrb[0].mxu0
        %1234 = vmatprep.mubr.f32.mxu0 0.0
        %1235 = vmatmul.mubr.f32.gmra.mrb[0].mxu0 %v597
        %v1236 = vpop.f32.mrb[0].mxu0
        %v1237 = vadd.f32 0.0, %v1236
        %v1238 = vpop.f32.mrb[0].mxu0
        %1239 = vmatprep.mubr.f32.mxu0 0.0
        %1240 = vmatmul.mubr.f32.gmra.mrb[0].mxu0 %v600
        %v1241 = vpop.f32.mrb[0].mxu0
        %v1242 = vadd.f32 0.0, %v1241
        %v1243 = vpop.f32.mrb[0].mxu0
        %1244 = vmatprep.mubr.f32.mxu0 0.0
        %1245 = vmatmul.mubr.f32.gmra.mrb[0].mxu0 %v603
        %v1246 = vpop.f32.mrb[0].mxu0
        %v1247 = vadd.f32 0.0, %v1246
        %v1248 = vpop.f32.mrb[0].mxu0
        %1249 = vmatprep.mubr.f32.mxu0 0.0
        %1250 = vmatmul.mubr.f32.gmra.mrb[0].mxu0 %v606
        %v1251 = vpop.f32.mrb[0].mxu0
        %v1252 = vadd.f32 0.0, %v1251
        %v1253 = vpop.f32.mrb[0].mxu0
        %1254 = vmatprep.mubr.f32.mxu0 0.0
        %1255 = vmatmul.mubr.f32.gmra.mrb[0].mxu0 %v609
        %v1256 = vpop.f32.mrb[0].mxu0
        %v1257 = vadd.f32 0.0, %v1256
        %v1258 = vpop.f32.mrb[0].mxu0
        %1259 = vmatprep.mubr.f32.mxu0 0.0
        %1260 = vmatmul.mubr.f32.gmra.mrb[0].mxu0 %v612
        %v1261 = vpop.f32.mrb[0].mxu0
        %v1262 = vadd.f32 0.0, %v1261
        %v1263 = vpop.f32.mrb[0].mxu0
        %1264 = vmatprep.mubr.f32.mxu0 0.0
        %1265 = vmatmul.mubr.f32.gmra.mrb[0].mxu0 %v615
        %v1266 = vpop.f32.mrb[0].mxu0
        %v1267 = vadd.f32 0.0, %v1266
        %v1268 = vpop.f32.mrb[0].mxu0
        %1269 = vmatprep.mubr.f32.mxu0 0.0
        %1270 = vmatmul.mubr.f32.gmra.mrb[0].mxu0 %v618
        %v1271 = vpop.f32.mrb[0].mxu0
        %v1272 = vadd.f32 0.0, %v1271
        %v1273 = vpop.f32.mrb[0].mxu0
        %1274 = vmatprep.mubr.f32.mxu0 0.0
        %1275 = vmatmul.mubr.f32.gmra.mrb[0].mxu0 %v621
        %v1276 = vpop.f32.mrb[0].mxu0
        %v1277 = vadd.f32 0.0, %v1276
        %v1278 = vpop.f32.mrb[0].mxu0
        %1279 = vmatprep.mubr.f32.mxu0 0.0
        %1280 = vmatmul.mubr.f32.gmra.mrb[0].mxu0 %v624
        %v1281 = vpop.f32.mrb[0].mxu0
        %v1282 = vadd.f32 0.0, %v1281
        %v1283 = vpop.f32.mrb[0].mxu0
        %1284 = vmatprep.mubr.f32.mxu0 0.0
        %1285 = vmatmul.mubr.f32.gmra.mrb[0].mxu0 %v627
        %v1286 = vpop.f32.mrb[0].mxu0
        %v1287 = vadd.f32 0.0, %v1286
        %v1288 = vpop.f32.mrb[0].mxu0
        %1289 = vmatprep.mubr.f32.mxu0 0.0
        %1290 = vmatmul.mubr.f32.gmra.mrb[0].mxu0 %v630
        %v1291 = vpop.f32.mrb[0].mxu0
        %v1292 = vadd.f32 0.0, %v1291
        %v1293 = vpop.f32.mrb[0].mxu0
        %1294 = vmatprep.mubr.f32.mxu0 0.0
        %1295 = vmatmul.mubr.f32.gmra.mrb[0].mxu0 %v633
        %v1296 = vpop.f32.mrb[0].mxu0
        %v1297 = vadd.f32 0.0, %v1296
        %v1298 = vpop.f32.mrb[0].mxu0
        %1299 = vmatprep.mubr.f32.mxu0 0.0
        %1300 = vmatmul.mubr.f32.gmra.mrb[0].mxu0 %v636
        %v1301 = vpop.f32.mrb[0].mxu0
        %v1302 = vadd.f32 0.0, %v1301
        %v1303 = vpop.f32.mrb[0].mxu0
        %1304 = vmatprep.mubr.f32.mxu0 0.0
        %1305 = vmatmul.mubr.f32.gmra.mrb[0].mxu0 %v639
        %v1306 = vpop.f32.mrb[0].mxu0
        %v1307 = vadd.f32 0.0, %v1306
        %v1308 = vpop.f32.mrb[0].mxu0
        %1309 = vmatprep.mubr.f32.mxu0 0.0
        %1310 = vmatmul.mubr.f32.gmra.mrb[0].mxu0 %v642
        %v1311 = vpop.f32.mrb[0].mxu0
        %v1312 = vadd.f32 0.0, %v1311
        %v1313 = vpop.f32.mrb[0].mxu0
        %1314 = vmatprep.mubr.f32.mxu0 0.0
        %1315 = vmatmul.mubr.f32.gmra.mrb[0].mxu0 %v645
        %v1316 = vpop.f32.mrb[0].mxu0
        %v1317 = vadd.f32 0.0, %v1316
        %v1318 = vpop.f32.mrb[0].mxu0
        %1319 = vmatprep.mubr.f32.mxu0 0.0
        %1320 = vmatmul.mubr.f32.gmra.mrb[0].mxu0 %v648
        %v1321 = vpop.f32.mrb[0].mxu0
        %v1322 = vadd.f32 0.0, %v1321
        %v1323 = vpop.f32.mrb[0].mxu0
        %1324 = vmatprep.mubr.f32.mxu0 0.0
        %1325 = vmatmul.mubr.f32.gmra.mrb[0].mxu0 %v651
        %v1326 = vpop.f32.mrb[0].mxu0
        %v1327 = vadd.f32 0.0, %v1326
        %v1328 = vpop.f32.mrb[0].mxu0
        %1329 = vmatprep.mubr.f32.mxu0 0.0
        %1330 = vmatmul.mubr.f32.gmra.mrb[0].mxu0 %v654
        %v1331 = vpop.f32.mrb[0].mxu0
        %v1332 = vadd.f32 0.0, %v1331
        %v1333 = vpop.f32.mrb[0].mxu0
        %1334 = vmatprep.mubr.f32.mxu0 0.0
        %1335 = vmatmul.mubr.f32.gmra.mrb[0].mxu0 %v657
        %v1336 = vpop.f32.mrb[0].mxu0
        %v1337 = vadd.f32 0.0, %v1336
        %v1338 = vpop.f32.mrb[0].mxu0
        %1339 = vmatprep.mubr.f32.mxu0 0.0
        %1340 = vmatmul.mubr.f32.gmra.mrb[0].mxu0 %v660
        %v1341 = vpop.f32.mrb[0].mxu0
        %v1342 = vadd.f32 0.0, %v1341
        %v1343 = vpop.f32.mrb[0].mxu0
        %1344 = vmatprep.mubr.f32.mxu0 0.0
        %1345 = vmatmul.mubr.f32.gmra.mrb[0].mxu0 %v663
        %v1346 = vpop.f32.mrb[0].mxu0
        %v1347 = vadd.f32 0.0, %v1346
        %v1348 = vpop.f32.mrb[0].mxu0
        %1349 = vmatprep.mubr.f32.mxu0 0.0
        %1350 = vmatmul.mubr.f32.gmra.mrb[0].mxu0 %v666
        %v1351 = vpop.f32.mrb[0].mxu0
        %v1352 = vadd.f32 0.0, %v1351
        %v1353 = vpop.f32.mrb[0].mxu0
        %1354 = vmatprep.mubr.f32.mxu0 0.0
        %1355 = vmatmul.mubr.f32.gmra.mrb[0].mxu0 %v669
        %v1356 = vpop.f32.mrb[0].mxu0
        %v1357 = vadd.f32 0.0, %v1356
        %v1358 = vpop.f32.mrb[0].mxu0
        %1359 = vmatprep.mubr.f32.mxu0 0.0
        %1360 = vmatmul.mubr.f32.gmra.mrb[0].mxu0 %v672
        %v1361 = vpop.f32.mrb[0].mxu0
        %v1362 = vadd.f32 0.0, %v1361
        %v1363 = vpop.f32.mrb[0].mxu0
        %1364 = vmatprep.mubr.f32.mxu0 0.0
        %1365 = vmatmul.mubr.f32.gmra.mrb[0].mxu0 %v675
        %v1366 = vpop.f32.mrb[0].mxu0
        %v1367 = vadd.f32 0.0, %v1366
        %v1368 = vpop.f32.mrb[0].mxu0
        %1369 = vmatprep.mubr.f32.mxu0 0.0
        %1370 = vmatmul.mubr.f32.gmra.mrb[0].mxu0 %v678
        %v1371 = vpop.f32.mrb[0].mxu0
        %v1372 = vadd.f32 0.0, %v1371
        %v1373 = vpop.f32.mrb[0].mxu0
        %1374 = vmatprep.mubr.f32.mxu0 0.0
        %1375 = vmatmul.mubr.f32.gmra.mrb[0].mxu0 %v681
        %v1376 = vpop.f32.mrb[0].mxu0
        %v1377 = vadd.f32 0.0, %v1376
        %v1378 = vpop.f32.mrb[0].mxu0
        %1379 = vmatprep.mubr.f32.mxu0 0.0
        %1380 = vmatmul.mubr.f32.gmra.mrb[0].mxu0 %v684
        %v1381 = vpop.f32.mrb[0].mxu0
        %v1382 = vadd.f32 0.0, %v1381
        %v1383 = vpop.f32.mrb[0].mxu0
        %1384 = vmatprep.mubr.f32.mxu0 0.0
        %1385 = vmatmul.mubr.f32.gmra.mrb[0].mxu0 %v687
        %v1386 = vpop.f32.mrb[0].mxu0
        %v1387 = vadd.f32 0.0, %v1386
        %v1388 = vpop.f32.mrb[0].mxu0
        %1389 = vmatprep.mubr.f32.mxu0 0.0
        %1390 = vmatmul.mubr.f32.gmra.mrb[0].mxu0 %v690
        %v1391 = vpop.f32.mrb[0].mxu0
        %v1392 = vadd.f32 0.0, %v1391
        %v1393 = vpop.f32.mrb[0].mxu0
        %1394 = vmatprep.mubr.f32.mxu0 0.0
        %1395 = vmatmul.mubr.f32.gmra.mrb[0].mxu0 %v693
        %v1396 = vpop.f32.mrb[0].mxu0
        %v1397 = vadd.f32 0.0, %v1396
        %v1398 = vpop.f32.mrb[0].mxu0
        %1399 = vdwg.mxu0
        %v1400 = vadd.f32 %v762, %v767
        %v1401 = vadd.f32 %v1400, %v772
        %v1402 = vadd.f32 %v1401, %v777
        %v1403 = vadd.f32 %v1402, %v782
        %v1404 = vadd.f32 %v1403, %v787
        %v1405 = vadd.f32 %v1404, %v792
        %v1406 = vadd.f32 %v1405, %v797
        %v1407 = vadd.f32 %v1406, %v802
        %v1408 = vadd.f32 %v1407, %v807
        %v1409 = vadd.f32 %v1408, %v812
        %v1410 = vadd.f32 %v1409, %v817
        %v1411 = vadd.f32 %v1410, %v822
        %v1412 = vadd.f32 %v1411, %v827
        %v1413 = vadd.f32 %v1412, %v832
        %v1414 = vadd.f32 %v1413, %v837
        %v1415 = vadd.f32 %v1414, %v842
        %v1416 = vadd.f32 %v1415, %v847
        %v1417 = vadd.f32 %v1416, %v852
        %v1418 = vadd.f32 %v1417, %v857
        %v1419 = vadd.f32 %v1418, %v862
        %v1420 = vadd.f32 %v1419, %v867
        %v1421 = vadd.f32 %v1420, %v872
        %v1422 = vadd.f32 %v1421, %v877
        %v1423 = vadd.f32 %v1422, %v882
        %v1424 = vadd.f32 %v1423, %v887
        %v1425 = vadd.f32 %v1424, %v892
        %v1426 = vadd.f32 %v1425, %v897
        %v1427 = vadd.f32 %v1426, %v902
        %v1428 = vadd.f32 %v1427, %v907
        %v1429 = vadd.f32 %v1428, %v912
        %v1430 = vadd.f32 %v1429, %v917
        %v1431 = vadd.f32 %v1430, %v922
        %v1432 = vadd.f32 %v1431, %v927
        %v1433 = vadd.f32 %v1432, %v932
        %v1434 = vadd.f32 %v1433, %v937
        %v1435 = vadd.f32 %v1434, %v942
        %v1436 = vadd.f32 %v1435, %v947
        %v1437 = vadd.f32 %v1436, %v952
        %v1438 = vadd.f32 %v1437, %v957
        %v1439 = vadd.f32 %v1438, %v962
        %v1440 = vadd.f32 %v1439, %v967
        %v1441 = vadd.f32 %v1440, %v972
        %v1442 = vadd.f32 %v1441, %v977
        %v1443 = vadd.f32 %v1442, %v982
        %v1444 = vadd.f32 %v1443, %v987
        %v1445 = vadd.f32 %v1444, %v992
        %v1446 = vadd.f32 %v1445, %v997
        %v1447 = vadd.f32 %v1446, %v1002
        %v1448 = vadd.f32 %v1447, %v1007
        %v1449 = vadd.f32 %v1448, %v1012
        %v1450 = vadd.f32 %v1449, %v1017
        %v1451 = vadd.f32 %v1450, %v1022
        %v1452 = vadd.f32 %v1451, %v1027
        %v1453 = vadd.f32 %v1452, %v1032
        %v1454 = vadd.f32 %v1453, %v1037
        %v1455 = vadd.f32 %v1454, %v1042
        %v1456 = vadd.f32 %v1455, %v1047
        %v1457 = vadd.f32 %v1456, %v1052
        %v1458 = vadd.f32 %v1457, %v1057
        %v1459 = vadd.f32 %v1458, %v1062
        %v1460 = vadd.f32 %v1459, %v1067
        %v1461 = vadd.f32 %v1460, %v1072
        %v1462 = vadd.f32 %v1461, %v1077
        %v1463 = vadd.f32 %v1462, %v1082
        %v1464 = vadd.f32 %v1463, %v1087
        %v1465 = vadd.f32 %v1464, %v1092
        %v1466 = vadd.f32 %v1465, %v1097
        %v1467 = vadd.f32 %v1466, %v1102
        %v1468 = vadd.f32 %v1467, %v1107
        %v1469 = vadd.f32 %v1468, %v1112
        %v1470 = vadd.f32 %v1469, %v1117
        %v1471 = vadd.f32 %v1470, %v1122
        %v1472 = vadd.f32 %v1471, %v1127
        %v1473 = vadd.f32 %v1472, %v1132
        %v1474 = vadd.f32 %v1473, %v1137
        %v1475 = vadd.f32 %v1474, %v1142
        %v1476 = vadd.f32 %v1475, %v1147
        %v1477 = vadd.f32 %v1476, %v1152
        %v1478 = vadd.f32 %v1477, %v1157
        %v1479 = vadd.f32 %v1478, %v1162
        %v1480 = vadd.f32 %v1479, %v1167
        %v1481 = vadd.f32 %v1480, %v1172
        %v1482 = vadd.f32 %v1481, %v1177
        %v1483 = vadd.f32 %v1482, %v1182
        %v1484 = vadd.f32 %v1483, %v1187
        %v1485 = vadd.f32 %v1484, %v1192
        %v1486 = vadd.f32 %v1485, %v1197
        %v1487 = vadd.f32 %v1486, %v1202
        %v1488 = vadd.f32 %v1487, %v1207
        %v1489 = vadd.f32 %v1488, %v1212
        %v1490 = vadd.f32 %v1489, %v1217
        %v1491 = vadd.f32 %v1490, %v1222
        %v1492 = vadd.f32 %v1491, %v1227
        %v1493 = vadd.f32 %v1492, %v1232
        %v1494 = vadd.f32 %v1493, %v1237
        %v1495 = vadd.f32 %v1494, %v1242
        %v1496 = vadd.f32 %v1495, %v1247
        %v1497 = vadd.f32 %v1496, %v1252
        %v1498 = vadd.f32 %v1497, %v1257
        %v1499 = vadd.f32 %v1498, %v1262
        %v1500 = vadd.f32 %v1499, %v1267
        %v1501 = vadd.f32 %v1500, %v1272
        %v1502 = vadd.f32 %v1501, %v1277
        %v1503 = vadd.f32 %v1502, %v1282
        %v1504 = vadd.f32 %v1503, %v1287
        %v1505 = vadd.f32 %v1504, %v1292
        %v1506 = vadd.f32 %v1505, %v1297
        %v1507 = vadd.f32 %v1506, %v1302
        %v1508 = vadd.f32 %v1507, %v1307
        %v1509 = vadd.f32 %v1508, %v1312
        %v1510 = vadd.f32 %v1509, %v1317
        %v1511 = vadd.f32 %v1510, %v1322
        %v1512 = vadd.f32 %v1511, %v1327
        %v1513 = vadd.f32 %v1512, %v1332
        %v1514 = vadd.f32 %v1513, %v1337
        %v1515 = vadd.f32 %v1514, %v1342
        %v1516 = vadd.f32 %v1515, %v1347
        %v1517 = vadd.f32 %v1516, %v1352
        %v1518 = vadd.f32 %v1517, %v1357
        %v1519 = vadd.f32 %v1518, %v1362
        %v1520 = vadd.f32 %v1519, %v1367
        %v1521 = vadd.f32 %v1520, %v1372
        %v1522 = vadd.f32 %v1521, %v1377
        %v1523 = vadd.f32 %v1522, %v1382
        %v1524 = vadd.f32 %v1523, %v1387
        %v1525 = vadd.f32 %v1524, %v1392
        %v1526 = vadd.f32 %v1525, %v1397
        %v1527 = vrot.slane %v1526, 4
        %v1528 = vadd.f32 %v1526, %v1527
        %v1529 = vrot.slane %v1528, 2
        %v1530 = vadd.f32 %v1528, %v1529
        %v1531 = vrot.slane %v1530, 1
        %v1532 = vadd.f32 %v1530, %v1531
        %1533 = vst [vmem:[%s167] sm:$0x1] %v1532
        %v1534 = vmul.f32 %v762, %v762
        %v1535 = vmul.f32 %v767, %v767
        %v1536 = vmul.f32 %v772, %v772
        %v1537 = vmul.f32 %v777, %v777
        %v1538 = vmul.f32 %v782, %v782
        %v1539 = vmul.f32 %v787, %v787
        %v1540 = vmul.f32 %v792, %v792
        %v1541 = vmul.f32 %v797, %v797
        %v1542 = vmul.f32 %v802, %v802
        %v1543 = vmul.f32 %v807, %v807
        %v1544 = vmul.f32 %v812, %v812
        %v1545 = vmul.f32 %v817, %v817
        %v1546 = vmul.f32 %v822, %v822
        %v1547 = vmul.f32 %v827, %v827
        %v1548 = vmul.f32 %v832, %v832
        %v1549 = vmul.f32 %v837, %v837
        %v1550 = vmul.f32 %v842, %v842
        %v1551 = vmul.f32 %v847, %v847
        %v1552 = vmul.f32 %v852, %v852
        %v1553 = vmul.f32 %v857, %v857
        %v1554 = vmul.f32 %v862, %v862
        %v1555 = vmul.f32 %v867, %v867
        %v1556 = vmul.f32 %v872, %v872
        %v1557 = vmul.f32 %v877, %v877
        %v1558 = vmul.f32 %v882, %v882
        %v1559 = vmul.f32 %v887, %v887
        %v1560 = vmul.f32 %v892, %v892
        %v1561 = vmul.f32 %v897, %v897
        %v1562 = vmul.f32 %v902, %v902
        %v1563 = vmul.f32 %v907, %v907
        %v1564 = vmul.f32 %v912, %v912
        %v1565 = vmul.f32 %v917, %v917
        %v1566 = vmul.f32 %v922, %v922
        %v1567 = vmul.f32 %v927, %v927
        %v1568 = vmul.f32 %v932, %v932
        %v1569 = vmul.f32 %v937, %v937
        %v1570 = vmul.f32 %v942, %v942
        %v1571 = vmul.f32 %v947, %v947
        %v1572 = vmul.f32 %v952, %v952
        %v1573 = vmul.f32 %v957, %v957
        %v1574 = vmul.f32 %v962, %v962
        %v1575 = vmul.f32 %v967, %v967
        %v1576 = vmul.f32 %v972, %v972
        %v1577 = vmul.f32 %v977, %v977
        %v1578 = vmul.f32 %v982, %v982
        %v1579 = vmul.f32 %v987, %v987
        %v1580 = vmul.f32 %v992, %v992
        %v1581 = vmul.f32 %v997, %v997
        %v1582 = vmul.f32 %v1002, %v1002
        %v1583 = vmul.f32 %v1007, %v1007
        %v1584 = vmul.f32 %v1012, %v1012
        %v1585 = vmul.f32 %v1017, %v1017
        %v1586 = vmul.f32 %v1022, %v1022
        %v1587 = vmul.f32 %v1027, %v1027
        %v1588 = vmul.f32 %v1032, %v1032
        %v1589 = vmul.f32 %v1037, %v1037
        %v1590 = vmul.f32 %v1042, %v1042
        %v1591 = vmul.f32 %v1047, %v1047
        %v1592 = vmul.f32 %v1052, %v1052
        %v1593 = vmul.f32 %v1057, %v1057
        %v1594 = vmul.f32 %v1062, %v1062
        %v1595 = vmul.f32 %v1067, %v1067
        %v1596 = vmul.f32 %v1072, %v1072
        %v1597 = vmul.f32 %v1077, %v1077
        %v1598 = vmul.f32 %v1082, %v1082
        %v1599 = vmul.f32 %v1087, %v1087
        %v1600 = vmul.f32 %v1092, %v1092
        %v1601 = vmul.f32 %v1097, %v1097
        %v1602 = vmul.f32 %v1102, %v1102
        %v1603 = vmul.f32 %v1107, %v1107
        %v1604 = vmul.f32 %v1112, %v1112
        %v1605 = vmul.f32 %v1117, %v1117
        %v1606 = vmul.f32 %v1122, %v1122
        %v1607 = vmul.f32 %v1127, %v1127
        %v1608 = vmul.f32 %v1132, %v1132
        %v1609 = vmul.f32 %v1137, %v1137
        %v1610 = vmul.f32 %v1142, %v1142
        %v1611 = vmul.f32 %v1147, %v1147
        %v1612 = vmul.f32 %v1152, %v1152
        %v1613 = vmul.f32 %v1157, %v1157
        %v1614 = vmul.f32 %v1162, %v1162
        %v1615 = vmul.f32 %v1167, %v1167
        %v1616 = vmul.f32 %v1172, %v1172
        %v1617 = vmul.f32 %v1177, %v1177
        %v1618 = vmul.f32 %v1182, %v1182
        %v1619 = vmul.f32 %v1187, %v1187
        %v1620 = vmul.f32 %v1192, %v1192
        %v1621 = vmul.f32 %v1197, %v1197
        %v1622 = vmul.f32 %v1202, %v1202
        %v1623 = vmul.f32 %v1207, %v1207
        %v1624 = vmul.f32 %v1212, %v1212
        %v1625 = vmul.f32 %v1217, %v1217
        %v1626 = vmul.f32 %v1222, %v1222
        %v1627 = vmul.f32 %v1227, %v1227
        %v1628 = vmul.f32 %v1232, %v1232
        %v1629 = vmul.f32 %v1237, %v1237
        %v1630 = vmul.f32 %v1242, %v1242
        %v1631 = vmul.f32 %v1247, %v1247
        %v1632 = vmul.f32 %v1252, %v1252
        %v1633 = vmul.f32 %v1257, %v1257
        %v1634 = vmul.f32 %v1262, %v1262
        %v1635 = vmul.f32 %v1267, %v1267
        %v1636 = vmul.f32 %v1272, %v1272
        %v1637 = vmul.f32 %v1277, %v1277
        %v1638 = vmul.f32 %v1282, %v1282
        %v1639 = vmul.f32 %v1287, %v1287
        %v1640 = vmul.f32 %v1292, %v1292
        %v1641 = vmul.f32 %v1297, %v1297
        %v1642 = vmul.f32 %v1302, %v1302
        %v1643 = vmul.f32 %v1307, %v1307
        %v1644 = vmul.f32 %v1312, %v1312
        %v1645 = vmul.f32 %v1317, %v1317
        %v1646 = vmul.f32 %v1322, %v1322
        %v1647 = vmul.f32 %v1327, %v1327
        %v1648 = vmul.f32 %v1332, %v1332
        %v1649 = vmul.f32 %v1337, %v1337
        %v1650 = vmul.f32 %v1342, %v1342
        %v1651 = vmul.f32 %v1347, %v1347
        %v1652 = vmul.f32 %v1352, %v1352
        %v1653 = vmul.f32 %v1357, %v1357
        %v1654 = vmul.f32 %v1362, %v1362
        %v1655 = vmul.f32 %v1367, %v1367
        %v1656 = vmul.f32 %v1372, %v1372
        %v1657 = vmul.f32 %v1377, %v1377
        %v1658 = vmul.f32 %v1382, %v1382
        %v1659 = vmul.f32 %v1387, %v1387
        %v1660 = vmul.f32 %v1392, %v1392
        %v1661 = vmul.f32 %v1397, %v1397
        %v1662 = vadd.f32 %v1534, %v1535
        %v1663 = vadd.f32 %v1662, %v1536
        %v1664 = vadd.f32 %v1663, %v1537
        %v1665 = vadd.f32 %v1664, %v1538
        %v1666 = vadd.f32 %v1665, %v1539
        %v1667 = vadd.f32 %v1666, %v1540
        %v1668 = vadd.f32 %v1667, %v1541
        %v1669 = vadd.f32 %v1668, %v1542
        %v1670 = vadd.f32 %v1669, %v1543
        %v1671 = vadd.f32 %v1670, %v1544
        %v1672 = vadd.f32 %v1671, %v1545
        %v1673 = vadd.f32 %v1672, %v1546
        %v1674 = vadd.f32 %v1673, %v1547
        %v1675 = vadd.f32 %v1674, %v1548
        %v1676 = vadd.f32 %v1675, %v1549
        %v1677 = vadd.f32 %v1676, %v1550
        %v1678 = vadd.f32 %v1677, %v1551
        %v1679 = vadd.f32 %v1678, %v1552
        %v1680 = vadd.f32 %v1679, %v1553
        %v1681 = vadd.f32 %v1680, %v1554
        %v1682 = vadd.f32 %v1681, %v1555
        %v1683 = vadd.f32 %v1682, %v1556
        %v1684 = vadd.f32 %v1683, %v1557
        %v1685 = vadd.f32 %v1684, %v1558
        %v1686 = vadd.f32 %v1685, %v1559
        %v1687 = vadd.f32 %v1686, %v1560
        %v1688 = vadd.f32 %v1687, %v1561
        %v1689 = vadd.f32 %v1688, %v1562
        %v1690 = vadd.f32 %v1689, %v1563
        %v1691 = vadd.f32 %v1690, %v1564
        %v1692 = vadd.f32 %v1691, %v1565
        %v1693 = vadd.f32 %v1692, %v1566
        %v1694 = vadd.f32 %v1693, %v1567
        %v1695 = vadd.f32 %v1694, %v1568
        %v1696 = vadd.f32 %v1695, %v1569
        %v1697 = vadd.f32 %v1696, %v1570
        %v1698 = vadd.f32 %v1697, %v1571
        %v1699 = vadd.f32 %v1698, %v1572
        %v1700 = vadd.f32 %v1699, %v1573
        %v1701 = vadd.f32 %v1700, %v1574
        %v1702 = vadd.f32 %v1701, %v1575
        %v1703 = vadd.f32 %v1702, %v1576
        %v1704 = vadd.f32 %v1703, %v1577
        %v1705 = vadd.f32 %v1704, %v1578
        %v1706 = vadd.f32 %v1705, %v1579
        %v1707 = vadd.f32 %v1706, %v1580
        %v1708 = vadd.f32 %v1707, %v1581
        %v1709 = vadd.f32 %v1708, %v1582
        %v1710 = vadd.f32 %v1709, %v1583
        %v1711 = vadd.f32 %v1710, %v1584
        %v1712 = vadd.f32 %v1711, %v1585
        %v1713 = vadd.f32 %v1712, %v1586
        %v1714 = vadd.f32 %v1713, %v1587
        %v1715 = vadd.f32 %v1714, %v1588
        %v1716 = vadd.f32 %v1715, %v1589
        %v1717 = vadd.f32 %v1716, %v1590
        %v1718 = vadd.f32 %v1717, %v1591
        %v1719 = vadd.f32 %v1718, %v1592
        %v1720 = vadd.f32 %v1719, %v1593
        %v1721 = vadd.f32 %v1720, %v1594
        %v1722 = vadd.f32 %v1721, %v1595
        %v1723 = vadd.f32 %v1722, %v1596
        %v1724 = vadd.f32 %v1723, %v1597
        %v1725 = vadd.f32 %v1724, %v1598
        %v1726 = vadd.f32 %v1725, %v1599
        %v1727 = vadd.f32 %v1726, %v1600
        %v1728 = vadd.f32 %v1727, %v1601
        %v1729 = vadd.f32 %v1728, %v1602
        %v1730 = vadd.f32 %v1729, %v1603
        %v1731 = vadd.f32 %v1730, %v1604
        %v1732 = vadd.f32 %v1731, %v1605
        %v1733 = vadd.f32 %v1732, %v1606
        %v1734 = vadd.f32 %v1733, %v1607
        %v1735 = vadd.f32 %v1734, %v1608
        %v1736 = vadd.f32 %v1735, %v1609
        %v1737 = vadd.f32 %v1736, %v1610
        %v1738 = vadd.f32 %v1737, %v1611
        %v1739 = vadd.f32 %v1738, %v1612
        %v1740 = vadd.f32 %v1739, %v1613
        %v1741 = vadd.f32 %v1740, %v1614
        %v1742 = vadd.f32 %v1741, %v1615
        %v1743 = vadd.f32 %v1742, %v1616
        %v1744 = vadd.f32 %v1743, %v1617
        %v1745 = vadd.f32 %v1744, %v1618
        %v1746 = vadd.f32 %v1745, %v1619
        %v1747 = vadd.f32 %v1746, %v1620
        %v1748 = vadd.f32 %v1747, %v1621
        %v1749 = vadd.f32 %v1748, %v1622
        %v1750 = vadd.f32 %v1749, %v1623
        %v1751 = vadd.f32 %v1750, %v1624
        %v1752 = vadd.f32 %v1751, %v1625
        %v1753 = vadd.f32 %v1752, %v1626
        %v1754 = vadd.f32 %v1753, %v1627
        %v1755 = vadd.f32 %v1754, %v1628
        %v1756 = vadd.f32 %v1755, %v1629
        %v1757 = vadd.f32 %v1756, %v1630
        %v1758 = vadd.f32 %v1757, %v1631
        %v1759 = vadd.f32 %v1758, %v1632
        %v1760 = vadd.f32 %v1759, %v1633
        %v1761 = vadd.f32 %v1760, %v1634
        %v1762 = vadd.f32 %v1761, %v1635
        %v1763 = vadd.f32 %v1762, %v1636
        %v1764 = vadd.f32 %v1763, %v1637
        %v1765 = vadd.f32 %v1764, %v1638
        %v1766 = vadd.f32 %v1765, %v1639
        %v1767 = vadd.f32 %v1766, %v1640
        %v1768 = vadd.f32 %v1767, %v1641
        %v1769 = vadd.f32 %v1768, %v1642
        %v1770 = vadd.f32 %v1769, %v1643
        %v1771 = vadd.f32 %v1770, %v1644
        %v1772 = vadd.f32 %v1771, %v1645
        %v1773 = vadd.f32 %v1772, %v1646
        %v1774 = vadd.f32 %v1773, %v1647
        %v1775 = vadd.f32 %v1774, %v1648
        %v1776 = vadd.f32 %v1775, %v1649
        %v1777 = vadd.f32 %v1776, %v1650
        %v1778 = vadd.f32 %v1777, %v1651
        %v1779 = vadd.f32 %v1778, %v1652
        %v1780 = vadd.f32 %v1779, %v1653
        %v1781 = vadd.f32 %v1780, %v1654
        %v1782 = vadd.f32 %v1781, %v1655
        %v1783 = vadd.f32 %v1782, %v1656
        %v1784 = vadd.f32 %v1783, %v1657
        %v1785 = vadd.f32 %v1784, %v1658
        %v1786 = vadd.f32 %v1785, %v1659
        %v1787 = vadd.f32 %v1786, %v1660
        %v1788 = vadd.f32 %v1787, %v1661
        %v1789 = vrot.slane %v1788, 4
        %v1790 = vadd.f32 %v1788, %v1789
        %v1791 = vrot.slane %v1790, 2
        %v1792 = vadd.f32 %v1790, %v1791
        %v1793 = vrot.slane %v1792, 1
        %v1794 = vadd.f32 %v1792, %v1793
        %1795 = vst [vmem:[%s173] sm:$0x1] %v1794
        %s1796 = sand.u32 %s76, 1
        %s1797 = scalar_lea.sflag [#allocation3], %s1796
        %s1798 = sand.u32 %s76, 1
        %s1799 = scalar_lea.vmem [#allocation2], %s1798
        %s1800 = sand.u32 %s102, 1
        %s1801 = scalar_lea.sflag [#allocation5], %s1800
        %s1802 = sand.u32 %s102, 1
        %s1803 = scalar_lea.vmem [#allocation4], %s1802
        // Predicated region
        $region29: #{tpu_custom_call.1} parent=27 // pred_check
          %p1804 = pneg %p86
        $region30: #{tpu_custom_call.1} parent=27 // pred_check_branch
          %1806 = sbr.rel (%p1804) target = $region32
        $region31: #{tpu_custom_call.1} parent=27 // pred_region
          %s1808 = ssub.s32 16, 16
          %1809 = vsyncadd %s1797, %s1808
          %s1810 = smul.addr %s21, 16
          %s1811 = scalar_lea.hbm %s2, %s1810
          %s1813 = sshll.u32 %s1799, 4
          %s1814 = int_to_ptr.vmem [resolvable:$true] %s1813
          %1816 = dma.vmem_to_hbm [thread:$0]  %s1814, 16, %s1811, %s1797
        $region32: #{tpu_custom_call.1} parent=27 // pred_fallthru
          _
        // Predicated region
        $region33: #{tpu_custom_call.1} parent=27 // pred_check
          %p1817 = pneg %p112
        $region34: #{tpu_custom_call.1} parent=27 // pred_check_branch
          %1819 = sbr.rel (%p1817) target = $region36
        $region35: #{tpu_custom_call.1} parent=27 // pred_region
          %s1821 = ssub.s32 16, 16
          %1822 = vsyncadd %s1801, %s1821
          %s1823 = smul.addr %s21, 16
          %s1824 = scalar_lea.hbm %s3, %s1823
          %s1826 = sshll.u32 %s1803, 4
          %s1827 = int_to_ptr.vmem [resolvable:$true] %s1826
          %1829 = dma.vmem_to_hbm [thread:$0]  %s1827, 16, %s1824, %s1801
        $region36: #{tpu_custom_call.1} parent=27 // pred_fallthru
          _
      $region28: #{tpu_custom_call.1} parent=5 // pred_fallthru
        _
      %p1830 = scmp.le.s32.totalorder 2, %s16
      // Predicated region
      $region37: #{tpu_custom_call.1} parent=5 // pred_check
        %p1831 = pneg %p1830
      $region38: #{tpu_custom_call.1} parent=5 // pred_check_branch
        %1833 = sbr.rel (%p1831) target = $region40
      $region39: #{tpu_custom_call.1} parent=5 // pred_region
        %s1834 = ssub.s32 %s16, 2
        // Predicated region
        $region41: #{tpu_custom_call.1} parent=39 // pred_check
          %p1835 = pneg %p92
        $region42: #{tpu_custom_call.1} parent=39 // pred_check_branch
          %1837 = sbr.rel (%p1835) target = $region44
        $region43: #{tpu_custom_call.1} parent=39 // pred_region
          %s1838 = sand.u32 %s77, 1
          %s1839 = scalar_lea.sflag [#allocation3], %s1838
          %s1840 = sand.u32 %s77, 1
          %s1841 = scalar_lea.vmem [#allocation2], %s1840
          %1842 = dma.done %s1839, 16
        $region44: #{tpu_custom_call.1} parent=39 // pred_fallthru
          _
        // Predicated region
        $region45: #{tpu_custom_call.1} parent=39 // pred_check
          %p1843 = pneg %p118
        $region46: #{tpu_custom_call.1} parent=39 // pred_check_branch
          %1845 = sbr.rel (%p1843) target = $region48
        $region47: #{tpu_custom_call.1} parent=39 // pred_region
          %s1846 = sand.u32 %s103, 1
          %s1847 = scalar_lea.sflag [#allocation5], %s1846
          %s1848 = sand.u32 %s103, 1
          %s1849 = scalar_lea.vmem [#allocation4], %s1848
          %1850 = dma.done %s1847, 16
        $region48: #{tpu_custom_call.1} parent=39 // pred_fallthru
          _
      $region40: #{tpu_custom_call.1} parent=5 // pred_fallthru
        _
    $region6: #{tpu_custom_call.1} parent=1 // loop_footer
      %s20 = sadd.s32 1, %s16
    $region7: #{tpu_custom_call.1} parent=1 // loop_footer_branch
      %15 = sbr.rel target = $region3
    $region8: #{tpu_custom_call.1} parent=1 // loop_exit
      _
    %1851 = vsyncpa [#allocation3], 1
    %s1852 = scalar_lea.sflag [#allocation3], 1
    %1853 = vsyncpa %s1852, 1
    %1854 = vsyncpa [#allocation5], 1
    %s1855 = scalar_lea.sflag [#allocation5], 1
    %1856 = vsyncpa %s1855, 1

</llo_original>
